<compile_context>
chip_gen: v5e
topology: v5e:2x2
jax: 0.10.0
libtpu: 0.0.40
codegen_flags: <defaults>
</compile_context>

<pallas_src>
import functools

import jax
import jax.numpy as jnp
from jax.experimental import pallas as pl
from jax.experimental.pallas import tpu as pltpu


def _round_up(x, m):
    return ((x + m - 1) // m) * m


def _vmem_budget_bytes():
    """~70% of physical VMEM (headroom for compiler scratch / semaphores)."""
    cap = 64 * 1024 * 1024  # conservative default = v7x per-TensorCore VMEM
    try:
        cap = int(getattr(pltpu.get_tpu_info(), "vmem_capacity_bytes", cap))
    except Exception:  # CPU / interpret mode / older jax
        pass
    return int(cap * 0.7)


# ---------------------------------------------------------------------------
# Fused kernel: pooled means (as MXU dots) + concat/pad + one wide cross matmul
# + f32 elementwise DCN-v2 chain.
# ---------------------------------------------------------------------------
def _dcnv2_fused_kernel(f_ref, c_ref, pf_ref, pc_ref, w_ref, b_ref, o_ref, *, depth):
    # cat_pad = mean-pool(feature) ++ mean-pool(context) ++ zeros   (TB, D_pad)
    # Pooling matrices fold mean + concat + lane padding into MXU dots;
    # accumulation is f32 regardless of the operand dtype.
    cat = jnp.dot(f_ref[...], pf_ref[...], preferred_element_type=jnp.float32)
    cat = cat + jnp.dot(c_ref[...], pc_ref[...], preferred_element_type=jnp.float32)

    # All depth Linears share `cat` as LHS -> ONE wide MXU matmul
    # (TB, D_pad) @ (D_pad, depth*D_pad), f32 accumulate, single f32 bias add.
    inter_all = jnp.dot(cat.astype(w_ref.dtype), w_ref[...],
                        preferred_element_type=jnp.float32)
    inter_all = inter_all + b_ref[...]          # (1, depth*D_pad) broadcast, f32

    d_pad = cat.shape[1]
    mid = cat                                   # f32 elementwise cross chain
    for i in range(depth):                      # static depth, unrolled
        inter = inter_all[:, i * d_pad:(i + 1) * d_pad]   # lane-aligned slice
        mid = mid * inter + cat                 # padded columns stay exactly 0

    o_ref[...] = mid.astype(o_ref.dtype)


# ---------------------------------------------------------------------------
# Constant preparation — hoisted out of the per-forward path (build once).
# ---------------------------------------------------------------------------
def prepare_dcn_params(weights_t, biases, featureDim, contextDim,
                       featureLen, contextLen, mxu_dtype=jnp.bfloat16):
    """Build the fused-kernel constants once.

    weights_t: (depth, D, D) pre-transposed torch weights so that
               cat @ weights_t[i] == nn.Linear_i(cat);  biases: (depth, D).
    Returns (Pf, Pc, W_all, b_all):
      Pf (Cf*Lf, D_pad), Pc (Cc*Lc, D_pad)  mean+concat+pad pooling operands
      W_all (D_pad, depth*D_pad)            depth weight blocks stacked along N
      b_all (1, depth*D_pad) f32            stacked biases (added post-MXU)
    """
    depth, D, D2 = weights_t.shape
    assert D == D2 == featureDim + contextDim
    D_pad = _round_up(D, 128)

    # Row c*L + l of Pf carries 1/Lf in column c; context columns offset by Cf.
    Pf = jnp.repeat(jnp.eye(featureDim, D_pad, k=0, dtype=jnp.float32),
                    featureLen, axis=0) * (1.0 / featureLen)
    Pc = jnp.repeat(jnp.eye(contextDim, D_pad, k=featureDim, dtype=jnp.float32),
                    contextLen, axis=0) * (1.0 / contextLen)

    w_pad = (jnp.zeros((depth, D_pad, D_pad), jnp.float32)
             .at[:, :D, :D].set(weights_t.astype(jnp.float32)))
    # (depth, D_pad, D_pad) -> (D_pad, depth*D_pad): block i occupies columns
    # [i*D_pad, (i+1)*D_pad), so inter_all[:, i*D_pad:(i+1)*D_pad] == cat @ W_i.
    w_all = jnp.transpose(w_pad, (1, 0, 2)).reshape(D_pad, depth * D_pad)
    b_all = (jnp.zeros((depth, D_pad), jnp.float32)
             .at[:, :D].set(biases.astype(jnp.float32))
             .reshape(1, depth * D_pad))

    # Explicit compute dtype for MXU operands; bias stays f32 (post-MXU add).
    return (Pf.astype(mxu_dtype), Pc.astype(mxu_dtype),
            w_all.astype(mxu_dtype), b_all)


def _choose_batch_tile(B, Kf, Kc, D_pad, depth, act_bytes, mxu_bytes,
                       batch_tile, vmem_budget):
    """VMEM-budget-aware batch tile, multiple of 8, >= 2 grid steps if possible."""
    B8 = _round_up(B, 8)
    # Resident, single-buffered constants (Pf, Pc, W_all, b_all).
    resident = ((Kf + Kc) * D_pad + D_pad * depth * D_pad) * mxu_bytes \
               + depth * D_pad * 4
    # Per-batch-row VMEM: double-buffered in/out tiles + live f32 temporaries.
    per_row = (2 * (Kf + Kc) * act_bytes      # feature/context tiles (x2 bufs)
               + 2 * D_pad * 4                # output tile (x2 bufs, f32)
               + (3 + depth) * D_pad * 4)     # cat / mid / inter_all values

    tb = min(batch_tile, B8)
    if B8 >= 16:
        # Keep >= 2 grid steps: v7x megacore sharding + input-DMA/compute overlap.
        tb = min(tb, max(8, (B8 // 2) // 8 * 8))
    tb = max(8, (tb // 8) * 8)

    avail = max(vmem_budget - resident, 2 << 20)
    while tb > 8 and per_row * tb > avail:
        tb -= 8
    return tb


# ---------------------------------------------------------------------------
# Forward wrapper: layout plumbing + single fused pallas_call.
# ---------------------------------------------------------------------------
def dcn_v2_forward(feature, context, params, *, batch_tile=512,
                   out_dtype=jnp.float32, trim=True):
    Pf, Pc, w_all, b_all = params
    B, Cf, Lf = feature.shape
    Bc, Cc, Lc = context.shape
    assert Bc == B
    Kf, Kc = Cf * Lf, Cc * Lc
    assert Pf.shape[0] == Kf and Pc.shape[0] == Kc, "params built for other shapes"
    D = Cf + Cc
    D_pad = Pf.shape[1]
    depth = w_all.shape[1] // D_pad
    act_dtype = Pf.dtype            # stream activations at MXU-operand precision

    # Free row-major reshapes; cast at the boundary so per-tile DMA is half-size
    # in bf16 mode (matters most on v5e's ~0.8 TB/s HBM).
    f_flat = feature.reshape(B, Kf).astype(act_dtype)
    c_flat = context.reshape(B, Kc).astype(act_dtype)

    vmem_budget = _vmem_budget_bytes()
    TB = _choose_batch_tile(B, Kf, Kc, D_pad, depth,
                            act_bytes=jnp.dtype(act_dtype).itemsize,
                            mxu_bytes=jnp.dtype(w_all.dtype).itemsize,
                            batch_tile=batch_tile, vmem_budget=vmem_budget)
    B_pad = _round_up(B, TB)
    if B_pad != B:
        f_flat = jnp.pad(f_flat, ((0, B_pad - B), (0, 0)))
        c_flat = jnp.pad(c_flat, ((0, B_pad - B), (0, 0)))

    grid = (B_pad // TB,)
    kernel = functools.partial(_dcnv2_fused_kernel, depth=depth)

    def _call(single_buffer_resident):
        # Constant-index blocks stay VMEM-resident across batch tiles; single-
        # buffer them so double-buffer VMEM is spent only on streamed tiles.
        res = ({"pipeline_mode": pl.Buffered(1)} if single_buffer_resident else {})
        return pl.pallas_call(
            kernel,
            out_shape=jax.ShapeDtypeStruct((B_pad, D_pad), out_dtype),
            grid=grid,
            in_specs=[
                pl.BlockSpec((TB, Kf), lambda b: (b, 0)),               # feature tile
                pl.BlockSpec((TB, Kc), lambda b: (b, 0)),               # context tile
                pl.BlockSpec((Kf, D_pad), lambda b: (0, 0), **res),     # Pf (resident)
                pl.BlockSpec((Kc, D_pad), lambda b: (0, 0), **res),     # Pc (resident)
                pl.BlockSpec((D_pad, depth * D_pad), lambda b: (0, 0), **res),  # W_all
                pl.BlockSpec((1, depth * D_pad), lambda b: (0, 0), **res),      # b_all
            ],
            out_specs=pl.BlockSpec((TB, D_pad), lambda b: (b, 0)),
            compiler_params=pltpu.CompilerParams(
                dimension_semantics=("parallel",),
                vmem_limit_bytes=int(vmem_budget),
            ),
        )(f_flat, c_flat, Pf, Pc, w_all, b_all)

    try:
        out = _call(True)
    except Exception:
        # Fallback for jax builds without BlockSpec.pipeline_mode / Buffered(1).
        out = _call(False)

    if not trim:
        # Padded (B_pad, D_pad) slab; rows >= B and columns >= D are exactly 0.
        return out
    return out[:B, :D]   # separate XLA copy — use trim=False if the consumer
                         # can take the padded slab (saves one pass over output)


# ---------------------------------------------------------------------------
# Deterministic parameter init (matches nn.Linear(D, D) shapes per depth).
# ---------------------------------------------------------------------------
def init_params(key, feature_dim, context_dim, depth):
    D = feature_dim + context_dim
    bound = 1.0 / float(D) ** 0.5
    keys = jax.random.split(key, 2 * depth)
    ws, bs = [], []
    for i in range(depth):
        W = jax.random.uniform(keys[2 * i], (D, D), jnp.float32, -bound, bound)  # torch (out,in)
        b = jax.random.uniform(keys[2 * i + 1], (D,), jnp.float32, -bound, bound)
        ws.append(W.T)          # pre-transpose so kernel does cat @ W^T (== nn.Linear)
        bs.append(b)
    return jnp.stack(ws), jnp.stack(bs)


if __name__ == "__main__":
    key = jax.random.PRNGKey(0)
    k_f, k_c, k_p = jax.random.split(key, 3)

    B = 16                      # >= 2 batch tiles -> both v7x TensorCores get work
    featureDim, contextDim = 16, 16
    Lf, Lc = 8, 8
    depth = 3

    feature = jax.random.normal(k_f, (B, featureDim, Lf), jnp.float32)
    context = jax.random.normal(k_c, (B, contextDim, Lc), jnp.float32)
    weights_t, biases = init_params(k_p, featureDim, contextDim, depth)

    # Pure-JAX f32 reference mirroring the PyTorch forward exactly.
    cat_ref = jnp.concatenate(
        [jnp.mean(feature, axis=2), jnp.mean(context, axis=2)], axis=1
    )
    mid_ref = cat_ref
    for i in range(depth):
        inter = cat_ref @ weights_t[i] + biases[i]
        mid_ref = mid_ref * inter + cat_ref

    # 1) f32 MXU operands: tight parity with fp32 torch numerics.
    params_f32 = prepare_dcn_params(weights_t, biases, featureDim, contextDim,
                                    Lf, Lc, mxu_dtype=jnp.float32)
    out_f32 = jax.block_until_ready(dcn_v2_forward(feature, context, params_f32))
    assert out_f32.shape == (B, featureDim + contextDim)
    err_f32 = float(jnp.max(jnp.abs(out_f32 - mid_ref)))
    assert jnp.allclose(out_f32, mid_ref, atol=1e-4, rtol=1e-4), err_f32

    # 2) Default mixed precision: bf16 MXU operands, f32 accumulate/elementwise.
    params_bf16 = prepare_dcn_params(weights_t, biases, featureDim, contextDim,
                                     Lf, Lc)
    out_bf16 = jax.block_until_ready(dcn_v2_forward(feature, context, params_bf16))
    assert out_bf16.shape == (B, featureDim + contextDim)
    err_bf16 = float(jnp.max(jnp.abs(out_bf16 - mid_ref)))
    assert jnp.allclose(out_bf16, mid_ref, atol=3e-2, rtol=3e-2), err_bf16

    print("KERNEL_OK")
</pallas_src>

<mosaic_0001>
module attributes {stable_mosaic.version = 11 : i64} {
  func.func @_dcnv2_fused_kernel(%arg0: i32, %arg1: memref<8x128xf32, #tpu.memory_space<vmem>>, %arg2: memref<8x128xf32, #tpu.memory_space<vmem>>, %arg3: memref<128x128xf32, #tpu.memory_space<vmem>>, %arg4: memref<128x128xf32, #tpu.memory_space<vmem>>, %arg5: memref<128x384xf32, #tpu.memory_space<vmem>>, %arg6: memref<1x384xf32, #tpu.memory_space<vmem>>, %arg7: memref<8x128xf32, #tpu.memory_space<vmem>>) attributes {dimension_semantics = [#tpu.dimension_semantics<parallel>], iteration_bounds = array<i64: 2>, scalar_prefetch = 0 : i64, scratch_operands = 0 : i64, tpu.core_type = #tpu.core_type<tc>, window_params = [{transform_indices = @transform_0, window_bounds = array<i64: 8, 128>}, {transform_indices = @transform_1, window_bounds = array<i64: 8, 128>}, {pipeline_mode = #tpu.pipeline_mode<synchronous>, transform_indices = @transform_2, window_bounds = array<i64: 128, 128>}, {pipeline_mode = #tpu.pipeline_mode<synchronous>, transform_indices = @transform_3, window_bounds = array<i64: 128, 128>}, {pipeline_mode = #tpu.pipeline_mode<synchronous>, transform_indices = @transform_4, window_bounds = array<i64: 128, 384>}, {pipeline_mode = #tpu.pipeline_mode<synchronous>, transform_indices = @transform_5, window_bounds = array<i64: 1, 384>}, {transform_indices = @transform_6, window_bounds = array<i64: 8, 128>}]} {
    %c0 = arith.constant 0 : index
    %c0_0 = arith.constant 0 : index
    %0 = vector.load %arg1[%c0, %c0_0] : memref<8x128xf32, #tpu.memory_space<vmem>>, vector<8x128xf32>
    %c0_1 = arith.constant 0 : index
    %c0_2 = arith.constant 0 : index
    %1 = vector.load %arg3[%c0_1, %c0_2] : memref<128x128xf32, #tpu.memory_space<vmem>>, vector<128x128xf32>
    %cst = arith.constant dense<0.000000e+00> : vector<8x128xf32>
    %2 = tpu.matmul %0, %1, %cst {dimension_numbers = #tpu.dot_dimension_numbers<[1], [0], [0], [1], [0, 0, 1, 1], [], []>} : vector<8x128xf32>, vector<128x128xf32>, vector<8x128xf32> -> vector<8x128xf32>
    %c0_3 = arith.constant 0 : index
    %c0_4 = arith.constant 0 : index
    %3 = vector.load %arg2[%c0_3, %c0_4] : memref<8x128xf32, #tpu.memory_space<vmem>>, vector<8x128xf32>
    %c0_5 = arith.constant 0 : index
    %c0_6 = arith.constant 0 : index
    %4 = vector.load %arg4[%c0_5, %c0_6] : memref<128x128xf32, #tpu.memory_space<vmem>>, vector<128x128xf32>
    %cst_7 = arith.constant dense<0.000000e+00> : vector<8x128xf32>
    %5 = tpu.matmul %3, %4, %cst_7 {dimension_numbers = #tpu.dot_dimension_numbers<[1], [0], [0], [1], [0, 0, 1, 1], [], []>} : vector<8x128xf32>, vector<128x128xf32>, vector<8x128xf32> -> vector<8x128xf32>
    %6 = arith.addf %2, %5 : vector<8x128xf32>
    %c0_8 = arith.constant 0 : index
    %c0_9 = arith.constant 0 : index
    %7 = vector.load %arg5[%c0_8, %c0_9] : memref<128x384xf32, #tpu.memory_space<vmem>>, vector<128x384xf32>
    %cst_10 = arith.constant dense<0.000000e+00> : vector<8x384xf32>
    %8 = tpu.matmul %6, %7, %cst_10 {dimension_numbers = #tpu.dot_dimension_numbers<[1], [0], [0], [1], [0, 0, 1, 1], [], []>} : vector<8x128xf32>, vector<128x384xf32>, vector<8x384xf32> -> vector<8x384xf32>
    %c0_11 = arith.constant 0 : index
    %c0_12 = arith.constant 0 : index
    %9 = vector.load %arg6[%c0_11, %c0_12] : memref<1x384xf32, #tpu.memory_space<vmem>>, vector<1x384xf32>
    %10 = vector.broadcast %9 : vector<1x384xf32> to vector<8x384xf32>
    %11 = arith.addf %8, %10 : vector<8x384xf32>
    %12 = vector.extract_strided_slice %11 {offsets = [0, 0], sizes = [8, 128], strides = [1, 1]} : vector<8x384xf32> to vector<8x128xf32>
    %13 = arith.mulf %6, %12 : vector<8x128xf32>
    %14 = arith.addf %13, %6 : vector<8x128xf32>
    %15 = vector.extract_strided_slice %11 {offsets = [0, 128], sizes = [8, 128], strides = [1, 1]} : vector<8x384xf32> to vector<8x128xf32>
    %16 = arith.mulf %14, %15 : vector<8x128xf32>
    %17 = arith.addf %16, %6 : vector<8x128xf32>
    %18 = vector.extract_strided_slice %11 {offsets = [0, 256], sizes = [8, 128], strides = [1, 1]} : vector<8x384xf32> to vector<8x128xf32>
    %19 = arith.mulf %17, %18 : vector<8x128xf32>
    %20 = arith.addf %19, %6 : vector<8x128xf32>
    %c0_13 = arith.constant 0 : index
    %c0_14 = arith.constant 0 : index
    %21 = vector.load %arg7[%c0_13, %c0_14] : memref<8x128xf32, #tpu.memory_space<vmem>>, vector<8x128xf32>
    tpu.vector_store %arg7[%c0_13, %c0_14], %20 {strides = array<i32>} : memref<8x128xf32, #tpu.memory_space<vmem>>, vector<8x128xf32>,
    return
  }
  func.func @transform_0(%arg0: i32) -> (i32, i32) {
    %c0_i32 = arith.constant 0 : i32
    %c0_i32_0 = arith.constant 0 : i32
    return %arg0, %c0_i32 : i32, i32
  }
  func.func @transform_1(%arg0: i32) -> (i32, i32) {
    %c0_i32 = arith.constant 0 : i32
    %c0_i32_0 = arith.constant 0 : i32
    return %arg0, %c0_i32 : i32, i32
  }
  func.func @transform_2(%arg0: i32) -> (i32, i32) {
    %c0_i32 = arith.constant 0 : i32
    %c0_i32_0 = arith.constant 0 : i32
    %c0_i32_1 = arith.constant 0 : i32
    return %c0_i32, %c0_i32_0 : i32, i32
  }
  func.func @transform_3(%arg0: i32) -> (i32, i32) {
    %c0_i32 = arith.constant 0 : i32
    %c0_i32_0 = arith.constant 0 : i32
    %c0_i32_1 = arith.constant 0 : i32
    return %c0_i32, %c0_i32_0 : i32, i32
  }
  func.func @transform_4(%arg0: i32) -> (i32, i32) {
    %c0_i32 = arith.constant 0 : i32
    %c0_i32_0 = arith.constant 0 : i32
    %c0_i32_1 = arith.constant 0 : i32
    return %c0_i32, %c0_i32_0 : i32, i32
  }
  func.func @transform_5(%arg0: i32) -> (i32, i32) {
    %c0_i32 = arith.constant 0 : i32
    %c0_i32_0 = arith.constant 0 : i32
    %c0_i32_1 = arith.constant 0 : i32
    return %c0_i32, %c0_i32_0 : i32, i32
  }
  func.func @transform_6(%arg0: i32) -> (i32, i32) {
    %c0_i32 = arith.constant 0 : i32
    %c0_i32_0 = arith.constant 0 : i32
    return %arg0, %c0_i32 : i32, i32
  }
}

module attributes {stable_mosaic.version = 11 : i64} {
  func.func @_dcnv2_fused_kernel(%arg0: i32, %arg1: memref<8x128xf32, #tpu.memory_space<vmem>>, %arg2: memref<8x128xf32, #tpu.memory_space<vmem>>, %arg3: memref<128x128xf32, #tpu.memory_space<vmem>>, %arg4: memref<128x128xf32, #tpu.memory_space<vmem>>, %arg5: memref<128x384xf32, #tpu.memory_space<vmem>>, %arg6: memref<1x384xf32, #tpu.memory_space<vmem>>, %arg7: memref<8x128xf32, #tpu.memory_space<vmem>>) attributes {dimension_semantics = [#tpu.dimension_semantics<parallel>], iteration_bounds = array<i64: 2>, scalar_prefetch = 0 : i64, scratch_operands = 0 : i64, tpu.core_type = #tpu.core_type<tc>, window_params = [{transform_indices = @transform_0, window_bounds = array<i64: 8, 128>}, {transform_indices = @transform_1, window_bounds = array<i64: 8, 128>}, {pipeline_mode = #tpu.pipeline_mode<synchronous>, transform_indices = @transform_2, window_bounds = array<i64: 128, 128>}, {pipeline_mode = #tpu.pipeline_mode<synchronous>, transform_indices = @transform_3, window_bounds = array<i64: 128, 128>}, {pipeline_mode = #tpu.pipeline_mode<synchronous>, transform_indices = @transform_4, window_bounds = array<i64: 128, 384>}, {pipeline_mode = #tpu.pipeline_mode<synchronous>, transform_indices = @transform_5, window_bounds = array<i64: 1, 384>}, {transform_indices = @transform_6, window_bounds = array<i64: 8, 128>}]} {
    %c0 = arith.constant 0 : index
    %c0_0 = arith.constant 0 : index
    %0 = vector.load %arg1[%c0, %c0_0] : memref<8x128xf32, #tpu.memory_space<vmem>>, vector<8x128xf32>
    %c0_1 = arith.constant 0 : index
    %c0_2 = arith.constant 0 : index
    %1 = vector.load %arg3[%c0_1, %c0_2] : memref<128x128xf32, #tpu.memory_space<vmem>>, vector<128x128xf32>
    %cst = arith.constant dense<0.000000e+00> : vector<8x128xf32>
    %2 = tpu.matmul %0, %1, %cst {dimension_numbers = #tpu.dot_dimension_numbers<[1], [0], [0], [1], [0, 0, 1, 1], [], []>} : vector<8x128xf32>, vector<128x128xf32>, vector<8x128xf32> -> vector<8x128xf32>
    %c0_3 = arith.constant 0 : index
    %c0_4 = arith.constant 0 : index
    %3 = vector.load %arg2[%c0_3, %c0_4] : memref<8x128xf32, #tpu.memory_space<vmem>>, vector<8x128xf32>
    %c0_5 = arith.constant 0 : index
    %c0_6 = arith.constant 0 : index
    %4 = vector.load %arg4[%c0_5, %c0_6] : memref<128x128xf32, #tpu.memory_space<vmem>>, vector<128x128xf32>
    %cst_7 = arith.constant dense<0.000000e+00> : vector<8x128xf32>
    %5 = tpu.matmul %3, %4, %cst_7 {dimension_numbers = #tpu.dot_dimension_numbers<[1], [0], [0], [1], [0, 0, 1, 1], [], []>} : vector<8x128xf32>, vector<128x128xf32>, vector<8x128xf32> -> vector<8x128xf32>
    %6 = arith.addf %2, %5 : vector<8x128xf32>
    %c0_8 = arith.constant 0 : index
    %c0_9 = arith.constant 0 : index
    %7 = vector.load %arg5[%c0_8, %c0_9] : memref<128x384xf32, #tpu.memory_space<vmem>>, vector<128x384xf32>
    %cst_10 = arith.constant dense<0.000000e+00> : vector<8x384xf32>
    %8 = tpu.matmul %6, %7, %cst_10 {dimension_numbers = #tpu.dot_dimension_numbers<[1], [0], [0], [1], [0, 0, 1, 1], [], []>} : vector<8x128xf32>, vector<128x384xf32>, vector<8x384xf32> -> vector<8x384xf32>
    %c0_11 = arith.constant 0 : index
    %c0_12 = arith.constant 0 : index
    %9 = vector.load %arg6[%c0_11, %c0_12] : memref<1x384xf32, #tpu.memory_space<vmem>>, vector<1x384xf32>
    %10 = vector.broadcast %9 : vector<1x384xf32> to vector<8x384xf32>
    %11 = arith.addf %8, %10 : vector<8x384xf32>
    %12 = vector.extract_strided_slice %11 {offsets = [0, 0], sizes = [8, 128], strides = [1, 1]} : vector<8x384xf32> to vector<8x128xf32>
    %13 = arith.mulf %6, %12 : vector<8x128xf32>
    %14 = arith.addf %13, %6 : vector<8x128xf32>
    %15 = vector.extract_strided_slice %11 {offsets = [0, 128], sizes = [8, 128], strides = [1, 1]} : vector<8x384xf32> to vector<8x128xf32>
    %16 = arith.mulf %14, %15 : vector<8x128xf32>
    %17 = arith.addf %16, %6 : vector<8x128xf32>
    %18 = vector.extract_strided_slice %11 {offsets = [0, 256], sizes = [8, 128], strides = [1, 1]} : vector<8x384xf32> to vector<8x128xf32>
    %19 = arith.mulf %17, %18 : vector<8x128xf32>
    %20 = arith.addf %19, %6 : vector<8x128xf32>
    %c0_13 = arith.constant 0 : index
    %c0_14 = arith.constant 0 : index
    %21 = vector.load %arg7[%c0_13, %c0_14] : memref<8x128xf32, #tpu.memory_space<vmem>>, vector<8x128xf32>
    tpu.vector_store %arg7[%c0_13, %c0_14], %20 {strides = array<i32>} : memref<8x128xf32, #tpu.memory_space<vmem>>, vector<8x128xf32>,
    return
  }
  func.func @transform_0(%arg0: i32) -> (i32, i32) {
    %c0_i32 = arith.constant 0 : i32
    %c0_i32_0 = arith.constant 0 : i32
    return %arg0, %c0_i32 : i32, i32
  }
  func.func @transform_1(%arg0: i32) -> (i32, i32) {
    %c0_i32 = arith.constant 0 : i32
    %c0_i32_0 = arith.constant 0 : i32
    return %arg0, %c0_i32 : i32, i32
  }
  func.func @transform_2(%arg0: i32) -> (i32, i32) {
    %c0_i32 = arith.constant 0 : i32
    %c0_i32_0 = arith.constant 0 : i32
    %c0_i32_1 = arith.constant 0 : i32
    return %c0_i32, %c0_i32_0 : i32, i32
  }
  func.func @transform_3(%arg0: i32) -> (i32, i32) {
    %c0_i32 = arith.constant 0 : i32
    %c0_i32_0 = arith.constant 0 : i32
    %c0_i32_1 = arith.constant 0 : i32
    return %c0_i32, %c0_i32_0 : i32, i32
  }
  func.func @transform_4(%arg0: i32) -> (i32, i32) {
    %c0_i32 = arith.constant 0 : i32
    %c0_i32_0 = arith.constant 0 : i32
    %c0_i32_1 = arith.constant 0 : i32
    return %c0_i32, %c0_i32_0 : i32, i32
  }
  func.func @transform_5(%arg0: i32) -> (i32, i32) {
    %c0_i32 = arith.constant 0 : i32
    %c0_i32_0 = arith.constant 0 : i32
    %c0_i32_1 = arith.constant 0 : i32
    return %c0_i32, %c0_i32_0 : i32, i32
  }
  func.func @transform_6(%arg0: i32) -> (i32, i32) {
    %c0_i32 = arith.constant 0 : i32
    %c0_i32_0 = arith.constant 0 : i32
    return %arg0, %c0_i32 : i32, i32
  }
}

</mosaic_0001>

<llo_original>
// kernel: tpu_custom_call.1
$region0: #{tpu_custom_call.1}
  #allocation0 [shape = 'u32[]', space=smem, size = 0x4, offset = 0x4, fixed_abs, tag = 'smem constant byte address 0x4 - core index']
  #allocation1 [shape = 'u32[72,128]{1,0:T(1,128)}', space=vmem, size = 0x9000, scoped, tag = 'internal scratch']
  %s0 = inlined_call_operand.hbm [shape: f32[16,128], index: 0, kind: input, shape index: {}]
  %s1 = inlined_call_operand.hbm [shape: f32[16,128], index: 1, kind: input, shape index: {}]
  %s2 = inlined_call_operand.hbm [shape: f32[128,128], index: 2, kind: input, shape index: {}]
  %s3 = inlined_call_operand.hbm [shape: f32[128,128], index: 3, kind: input, shape index: {}]
  %s4 = inlined_call_operand.hbm [shape: f32[128,384], index: 4, kind: input, shape index: {}]
  %s5 = inlined_call_operand.vmem [shape: f32[1,384], index: 5, kind: input, shape index: {}]
  %s6 = inlined_call_operand.hbm [shape: f32[16,128], index: 6, kind: output, shape index: {}]
  %s7 = sld [smem:[#allocation0]]
  $region77: #{tpu_custom_call.1} parent=0
    _
  %s9 = ssub.s32 1, %s7
  %s10 = scalar_select 0, %s9, %s7
  $region1: #{tpu_custom_call.1} parent=0
    #allocation2 [shape = 'u8[8192]{0}', space=vmem, size = 0x2000, scoped, tag = 'input window, operand 0']
    #allocation3 [shape = 's32[2]{0}', space=sflag, size = 0x8, scoped, tag = 'scoped memory for tpu_custom_call.1']
    #allocation4 [shape = 's32[2]{0}', space=sflag, size = 0x8, scoped, tag = 'scoped memory for tpu_custom_call.1']
    #allocation5 [shape = 'u8[8192]{0}', space=vmem, size = 0x2000, scoped, tag = 'input window, operand 1']
    #allocation6 [shape = 's32[2]{0}', space=sflag, size = 0x8, scoped, tag = 'scoped memory for tpu_custom_call.1']
    #allocation7 [shape = 'u8[65536]{0}', space=vmem, size = 0x10000, scoped, tag = 'input window, operand 2, single buffered']
    #allocation8 [shape = 'u8[65536]{0}', space=vmem, size = 0x10000, scoped, tag = 'input window, operand 3, single buffered']
    #allocation9 [shape = 's32[1]{0}', space=sflag, size = 0x4, scoped, tag = 'scoped memory for tpu_custom_call.1']
    #allocation10 [shape = 'u8[196608]{0}', space=vmem, size = 0x30000, scoped, tag = 'input window, operand 4, single buffered']
    #allocation11 [shape = 'u8[8192]{0}', space=vmem, size = 0x2000, scoped, tag = 'output window, operand 0']
    %11 = vsyncpa [#allocation3], 0
    %s12 = scalar_lea.sflag [#allocation3], 1
    %13 = vsyncpa %s12, 0
    %14 = vsyncpa [#allocation6], 0
    %s15 = scalar_lea.sflag [#allocation6], 1
    %16 = vsyncpa %s15, 0
    %17 = vsyncpa [#allocation9], 0
    %18 = vsyncpa [#allocation4], 0
    %s19 = scalar_lea.sflag [#allocation4], 1
    %20 = vsyncpa %s19, 0
    loop: start=0, step=1, limit=4
    $region2: #{tpu_custom_call.1} parent=1 // loop_pre_header
      _
    $region3: #{tpu_custom_call.1} parent=1 // loop_header
      %s22 = sphi 0, %s26
      %p23 = scmp.ge.s32.totalorder %s22, 4
      %s32 = sphi 0, %s34
      %s35 = sphi 0, %s32
      %s36 = sphi 0, %s35
      %s52 = sphi 0, %s36
      %s58 = sphi 0, %s60
      %s61 = sphi 0, %s58
      %s62 = sphi 0, %s61
      %s78 = sphi 0, %s62
      %s82 = sphi 0, %s82
      %s84 = sphi 0, %s82
      %s85 = sphi 0, %s84
      %s99 = sphi 0, %s85
      %s103 = sphi 0, %s103
      %s105 = sphi 0, %s103
      %s106 = sphi 0, %s105
      %s120 = sphi 0, %s106
      %s124 = sphi 0, %s124
      %s126 = sphi 0, %s124
      %s127 = sphi 0, %s126
      %s141 = sphi 0, %s127
      %s145 = sphi 0, %s145
      %s147 = sphi 0, %s145
      %s148 = sphi 0, %s147
      %s162 = sphi 0, %s148
      %s168 = sphi 0, %s170
      %s171 = sphi 0, %s168
      %s172 = sphi 0, %s171
      %s188 = sphi 0, %s172
    $region4: #{tpu_custom_call.1} parent=1 // loop_header_branch
      %25 = sbr.rel (%p23) target = $region8
    $region5: #{tpu_custom_call.1} parent=1 // loop_body
      %s27 = ssub.s32 %s22, 1
      %s28 = ssub.s32 %s22, 2
      %s29 = sadd.s32 %s22, 1
      %s30 = ssub.s32 %s22, %s29
      %p31 = scmp.eq.s32.totalorder %s30, 0
      %s33 = sadd.s32 %s32, 1
      %s34 = scalar_select %p31, %s32, %s33
      %p37 = pneg %p31
      %p38 = scmp.eq.s32.totalorder %s22, 1
      %p39 = por %p37, %p38
      %p40 = scmp.ne.s32.totalorder %s32, %s35
      %p41 = scmp.eq.s32.totalorder %s22, 0
      %p42 = por %p40, %p41
      %p43 = scmp.ne.s32.totalorder %s32, %s35
      %p44 = scmp.eq.s32.totalorder %s27, 1
      %p45 = por %p43, %p44
      %p46 = scmp.ne.s32.totalorder %s35, %s36
      %p47 = scmp.eq.s32.totalorder %s27, 0
      %p48 = por %p46, %p47
      %p49 = scmp.ne.s32.totalorder %s35, %s36
      %p50 = scmp.eq.s32.totalorder %s28, 1
      %p51 = por %p49, %p50
      %p53 = scmp.ne.s32.totalorder %s36, %s52
      %p54 = scmp.eq.s32.totalorder %s28, 0
      %p55 = por %p53, %p54
      %s56 = ssub.s32 %s22, %s29
      %p57 = scmp.eq.s32.totalorder %s56, 0
      %s59 = sadd.s32 %s58, 1
      %s60 = scalar_select %p57, %s58, %s59
      %p63 = pneg %p57
      %p64 = scmp.eq.s32.totalorder %s22, 1
      %p65 = por %p63, %p64
      %p66 = scmp.ne.s32.totalorder %s58, %s61
      %p67 = scmp.eq.s32.totalorder %s22, 0
      %p68 = por %p66, %p67
      %p69 = scmp.ne.s32.totalorder %s58, %s61
      %p70 = scmp.eq.s32.totalorder %s27, 1
      %p71 = por %p69, %p70
      %p72 = scmp.ne.s32.totalorder %s61, %s62
      %p73 = scmp.eq.s32.totalorder %s27, 0
      %p74 = por %p72, %p73
      %p75 = scmp.ne.s32.totalorder %s61, %s62
      %p76 = scmp.eq.s32.totalorder %s28, 1
      %p77 = por %p75, %p76
      %p79 = scmp.ne.s32.totalorder %s62, %s78
      %p80 = scmp.eq.s32.totalorder %s28, 0
      %p81 = por %p79, %p80
      %s83 = sadd.s32 %s82, 1
      %p86 = scmp.eq.s32.totalorder %s22, 1
      %p87 = scmp.ne.s32.totalorder %s82, %s84
      %p88 = scmp.eq.s32.totalorder %s22, 0
      %p89 = por %p87, %p88
      %p90 = scmp.ne.s32.totalorder %s82, %s84
      %p91 = scmp.eq.s32.totalorder %s27, 1
      %p92 = por %p90, %p91
      %p93 = scmp.ne.s32.totalorder %s84, %s85
      %p94 = scmp.eq.s32.totalorder %s27, 0
      %p95 = por %p93, %p94
      %p96 = scmp.ne.s32.totalorder %s84, %s85
      %p97 = scmp.eq.s32.totalorder %s28, 1
      %p98 = por %p96, %p97
      %p100 = scmp.ne.s32.totalorder %s85, %s99
      %p101 = scmp.eq.s32.totalorder %s28, 0
      %p102 = por %p100, %p101
      %s104 = sadd.s32 %s103, 1
      %p107 = scmp.eq.s32.totalorder %s22, 1
      %p108 = scmp.ne.s32.totalorder %s103, %s105
      %p109 = scmp.eq.s32.totalorder %s22, 0
      %p110 = por %p108, %p109
      %p111 = scmp.ne.s32.totalorder %s103, %s105
      %p112 = scmp.eq.s32.totalorder %s27, 1
      %p113 = por %p111, %p112
      %p114 = scmp.ne.s32.totalorder %s105, %s106
      %p115 = scmp.eq.s32.totalorder %s27, 0
      %p116 = por %p114, %p115
      %p117 = scmp.ne.s32.totalorder %s105, %s106
      %p118 = scmp.eq.s32.totalorder %s28, 1
      %p119 = por %p117, %p118
      %p121 = scmp.ne.s32.totalorder %s106, %s120
      %p122 = scmp.eq.s32.totalorder %s28, 0
      %p123 = por %p121, %p122
      %s125 = sadd.s32 %s124, 1
      %p128 = scmp.eq.s32.totalorder %s22, 1
      %p129 = scmp.ne.s32.totalorder %s124, %s126
      %p130 = scmp.eq.s32.totalorder %s22, 0
      %p131 = por %p129, %p130
      %p132 = scmp.ne.s32.totalorder %s124, %s126
      %p133 = scmp.eq.s32.totalorder %s27, 1
      %p134 = por %p132, %p133
      %p135 = scmp.ne.s32.totalorder %s126, %s127
      %p136 = scmp.eq.s32.totalorder %s27, 0
      %p137 = por %p135, %p136
      %p138 = scmp.ne.s32.totalorder %s126, %s127
      %p139 = scmp.eq.s32.totalorder %s28, 1
      %p140 = por %p138, %p139
      %p142 = scmp.ne.s32.totalorder %s127, %s141
      %p143 = scmp.eq.s32.totalorder %s28, 0
      %p144 = por %p142, %p143
      %s146 = sadd.s32 %s145, 1
      %p149 = scmp.eq.s32.totalorder %s22, 1
      %p150 = scmp.ne.s32.totalorder %s145, %s147
      %p151 = scmp.eq.s32.totalorder %s22, 0
      %p152 = por %p150, %p151
      %p153 = scmp.ne.s32.totalorder %s145, %s147
      %p154 = scmp.eq.s32.totalorder %s27, 1
      %p155 = por %p153, %p154
      %p156 = scmp.ne.s32.totalorder %s147, %s148
      %p157 = scmp.eq.s32.totalorder %s27, 0
      %p158 = por %p156, %p157
      %p159 = scmp.ne.s32.totalorder %s147, %s148
      %p160 = scmp.eq.s32.totalorder %s28, 1
      %p161 = por %p159, %p160
      %p163 = scmp.ne.s32.totalorder %s148, %s162
      %p164 = scmp.eq.s32.totalorder %s28, 0
      %p165 = por %p163, %p164
      %s166 = ssub.s32 %s22, %s29
      %p167 = scmp.eq.s32.totalorder %s166, 0
      %s169 = sadd.s32 %s168, 1
      %s170 = scalar_select %p167, %s168, %s169
      %p173 = pneg %p167
      %p174 = scmp.eq.s32.totalorder %s22, 1
      %p175 = por %p173, %p174
      %p176 = scmp.ne.s32.totalorder %s168, %s171
      %p177 = scmp.eq.s32.totalorder %s22, 0
      %p178 = por %p176, %p177
      %p179 = scmp.ne.s32.totalorder %s168, %s171
      %p180 = scmp.eq.s32.totalorder %s27, 1
      %p181 = por %p179, %p180
      %p182 = scmp.ne.s32.totalorder %s171, %s172
      %p183 = scmp.eq.s32.totalorder %s27, 0
      %p184 = por %p182, %p183
      %p185 = scmp.ne.s32.totalorder %s171, %s172
      %p186 = scmp.eq.s32.totalorder %s28, 1
      %p187 = por %p185, %p186
      %p189 = scmp.ne.s32.totalorder %s172, %s188
      %p190 = scmp.eq.s32.totalorder %s28, 0
      %p191 = por %p189, %p190
      %p192 = scmp.le.s32.totalorder 1, %s22
      %p193 = scmp.lt.s32.totalorder %s22, 3
      %p194 = pnand %p192, %p193
      %p195 = pneg %p194
      // Predicated region
      $region9: #{tpu_custom_call.1} parent=5 // pred_check
        _
      $region10: #{tpu_custom_call.1} parent=5 // pred_check_branch
        %197 = sbr.rel (%p194) target = $region12
      $region11: #{tpu_custom_call.1} parent=5 // pred_region
        %s198 = ssub.s32 %s22, 1
        // Predicated region
        $region13: #{tpu_custom_call.1} parent=11 // pred_check
          %p199 = pneg %p95
        $region14: #{tpu_custom_call.1} parent=11 // pred_check_branch
          %201 = sbr.rel (%p199) target = $region16
        $region15: #{tpu_custom_call.1} parent=11 // pred_region
          %203 = vsyncadd [#allocation6], 0
          %s204 = sshll.u32 %s2, 4
          %s205 = int_to_ptr.hbm [resolvable:$true] %s204
          %s206 = sshll.u32 [#allocation7], 4
          %s207 = int_to_ptr.vmem [resolvable:$true] %s206
          %212 = dma.hbm_to_vmem [thread:$0]  %s205, 2048, %s207, [#allocation6], 128, 128, 8
        $region16: #{tpu_custom_call.1} parent=11 // pred_fallthru
          _
        // Predicated region
        $region17: #{tpu_custom_call.1} parent=11 // pred_check
          %p213 = pneg %p116
        $region18: #{tpu_custom_call.1} parent=11 // pred_check_branch
          %215 = sbr.rel (%p213) target = $region20
        $region19: #{tpu_custom_call.1} parent=11 // pred_region
          %217 = vsyncadd [#allocation9], 0
          %s218 = sshll.u32 %s3, 4
          %s219 = int_to_ptr.hbm [resolvable:$true] %s218
          %s220 = sshll.u32 [#allocation8], 4
          %s221 = int_to_ptr.vmem [resolvable:$true] %s220
          %226 = dma.hbm_to_vmem [thread:$0]  %s219, 2048, %s221, [#allocation9], 128, 128, 8
        $region20: #{tpu_custom_call.1} parent=11 // pred_fallthru
          _
        // Predicated region
        $region21: #{tpu_custom_call.1} parent=11 // pred_check
          %p227 = pneg %p137
        $region22: #{tpu_custom_call.1} parent=11 // pred_check_branch
          %229 = sbr.rel (%p227) target = $region24
        $region23: #{tpu_custom_call.1} parent=11 // pred_region
          %231 = vsyncadd [#allocation9], 0
          %s232 = sshll.u32 %s4, 4
          %s233 = int_to_ptr.hbm [resolvable:$true] %s232
          %s234 = sshll.u32 [#allocation10], 4
          %s235 = int_to_ptr.vmem [resolvable:$true] %s234
          %240 = dma.hbm_to_vmem [thread:$0]  %s233, 6144, %s235, [#allocation9], 384, 384, 24
        $region24: #{tpu_custom_call.1} parent=11 // pred_fallthru
          _
        // Predicated region
        $region25: #{tpu_custom_call.1} parent=11 // pred_check
          %p241 = pneg %p158
        $region26: #{tpu_custom_call.1} parent=11 // pred_check_branch
          %243 = sbr.rel (%p241) target = $region28
        $region27: #{tpu_custom_call.1} parent=11 // pred_region
          _
        $region28: #{tpu_custom_call.1} parent=11 // pred_fallthru
          _
      $region12: #{tpu_custom_call.1} parent=5 // pred_fallthru
        _
      %p244 = scmp.lt.s32.totalorder %s22, 2
      // Predicated region
      $region29: #{tpu_custom_call.1} parent=5 // pred_check
        %p245 = pneg %p244
      $region30: #{tpu_custom_call.1} parent=5 // pred_check_branch
        %247 = sbr.rel (%p245) target = $region32
      $region31: #{tpu_custom_call.1} parent=5 // pred_region
        // Predicated region
        $region33: #{tpu_custom_call.1} parent=31 // pred_check
          %p248 = pneg %p42
        $region34: #{tpu_custom_call.1} parent=31 // pred_check_branch
          %250 = sbr.rel (%p248) target = $region36
        $region35: #{tpu_custom_call.1} parent=31 // pred_region
          %s251 = sand.u32 %s32, 1
          %s252 = scalar_lea.sflag [#allocation3], %s251
          %s253 = sand.u32 %s32, 1
          %s254 = smul.addr %s253, 8
          %s255 = scalar_lea.vmem [#allocation2], %s254
          %257 = vsyncadd %s252, 0
          %s258 = smul.addr %s22, 8
          %s259 = scalar_lea.hbm %s0, %s258
          %s261 = sshll.u32 %s259, 4
          %s262 = int_to_ptr.hbm [resolvable:$true] %s261
          %s263 = sshll.u32 %s255, 4
          %s264 = int_to_ptr.vmem [resolvable:$true] %s263
          %266 = dma.hbm_to_vmem [thread:$0]  %s262, 128, %s264, %s252
        $region36: #{tpu_custom_call.1} parent=31 // pred_fallthru
          _
        // Predicated region
        $region37: #{tpu_custom_call.1} parent=31 // pred_check
          %p267 = pneg %p68
        $region38: #{tpu_custom_call.1} parent=31 // pred_check_branch
          %269 = sbr.rel (%p267) target = $region40
        $region39: #{tpu_custom_call.1} parent=31 // pred_region
          %s270 = sand.u32 %s22, 1
          %s271 = scalar_lea.sflag [#allocation6], %s270
          %s272 = sand.u32 %s58, 1
          %s273 = smul.addr %s272, 8
          %s274 = scalar_lea.vmem [#allocation5], %s273
          %276 = vsyncadd %s271, 0
          %s277 = smul.addr %s22, 8
          %s278 = scalar_lea.hbm %s1, %s277
          %s280 = sshll.u32 %s278, 4
          %s281 = int_to_ptr.hbm [resolvable:$true] %s280
          %s282 = sshll.u32 %s274, 4
          %s283 = int_to_ptr.vmem [resolvable:$true] %s282
          %285 = dma.hbm_to_vmem [thread:$0]  %s281, 128, %s283, %s271
        $region40: #{tpu_custom_call.1} parent=31 // pred_fallthru
          _
      $region32: #{tpu_custom_call.1} parent=5 // pred_fallthru
        _
      %p286 = scmp.le.s32.totalorder 1, %s22
      %p287 = scmp.lt.s32.totalorder %s22, 3
      %p288 = pnand %p286, %p287
      %p289 = pneg %p288
      // Predicated region
      $region41: #{tpu_custom_call.1} parent=5 // pred_check
        _
      $region42: #{tpu_custom_call.1} parent=5 // pred_check_branch
        %291 = sbr.rel (%p288) target = $region44
      $region43: #{tpu_custom_call.1} parent=5 // pred_region
        %s292 = ssub.s32 %s22, 1
        %s293 = sand.u32 %s35, 1
        %s294 = scalar_lea.sflag [#allocation3], %s293
        %s295 = sand.u32 %s35, 1
        %s296 = smul.addr %s295, 8
        %s297 = scalar_lea.vmem [#allocation2], %s296
        // Predicated region
        $region45: #{tpu_custom_call.1} parent=43 // pred_check
          %p298 = pneg %p48
        $region46: #{tpu_custom_call.1} parent=43 // pred_check_branch
          %300 = sbr.rel (%p298) target = $region48
        $region47: #{tpu_custom_call.1} parent=43 // pred_region
          %302 = dma.done %s294, 128
        $region48: #{tpu_custom_call.1} parent=43 // pred_fallthru
          _
        %s303 = sand.u32 %s27, 1
        %s304 = scalar_lea.sflag [#allocation6], %s303
        %s305 = sand.u32 %s61, 1
        %s306 = smul.addr %s305, 8
        %s307 = scalar_lea.vmem [#allocation5], %s306
        // Predicated region
        $region49: #{tpu_custom_call.1} parent=43 // pred_check
          %p308 = pneg %p74
        $region50: #{tpu_custom_call.1} parent=43 // pred_check_branch
          %310 = sbr.rel (%p308) target = $region52
        $region51: #{tpu_custom_call.1} parent=43 // pred_region
          %312 = dma.done %s304, 128
        $region52: #{tpu_custom_call.1} parent=43 // pred_fallthru
          _
        // Predicated region
        $region53: #{tpu_custom_call.1} parent=43 // pred_check
          %p313 = pneg %p95
        $region54: #{tpu_custom_call.1} parent=43 // pred_check_branch
          %315 = sbr.rel (%p313) target = $region56
        $region55: #{tpu_custom_call.1} parent=43 // pred_region
          %317 = dma.done [#allocation6], 2048
        $region56: #{tpu_custom_call.1} parent=43 // pred_fallthru
          _
        // Predicated region
        $region57: #{tpu_custom_call.1} parent=43 // pred_check
          %p318 = pneg %p116
        $region58: #{tpu_custom_call.1} parent=43 // pred_check_branch
          %320 = sbr.rel (%p318) target = $region60
        $region59: #{tpu_custom_call.1} parent=43 // pred_region
          %322 = dma.done [#allocation9], 2048
        $region60: #{tpu_custom_call.1} parent=43 // pred_fallthru
          _
        // Predicated region
        $region61: #{tpu_custom_call.1} parent=43 // pred_check
          %p323 = pneg %p137
        $region62: #{tpu_custom_call.1} parent=43 // pred_check_branch
          %325 = sbr.rel (%p323) target = $region64
        $region63: #{tpu_custom_call.1} parent=43 // pred_region
          %327 = dma.done [#allocation9], 6144
        $region64: #{tpu_custom_call.1} parent=43 // pred_fallthru
          _
        %s328 = sand.u32 %s35, 1
        %s329 = scalar_lea.sflag [#allocation3], %s328
        %s330 = sand.u32 %s35, 1
        %s331 = smul.addr %s330, 8
        %s332 = scalar_lea.vmem [#allocation2], %s331
        %p333 = pneg %p48
        %p334 = pneg %p45
        %s335 = sand.u32 %s27, 1
        %s336 = scalar_lea.sflag [#allocation6], %s335
        %s337 = sand.u32 %s61, 1
        %s338 = smul.addr %s337, 8
        %s339 = scalar_lea.vmem [#allocation5], %s338
        %p340 = pneg %p74
        %p341 = pneg %p71
        %p342 = pneg %p95
        %p343 = pneg %p92
        %p344 = pneg %p116
        %p345 = pneg %p113
        %p346 = pneg %p137
        %p347 = pneg %p134
        %p348 = pneg %p158
        %p349 = pneg %p155
        %p350 = pneg %p184
        %p351 = pneg %p181
        %s352 = sand.u32 %s171, 1
        %s353 = scalar_lea.sflag [#allocation4], %s352
        %s354 = sand.u32 %s171, 1
        %s355 = smul.addr %s354, 8
        %s356 = scalar_lea.vmem [#allocation11], %s355
        %v357 = vld [vmem:[%s297] sm:$0xff]
        %v358 = vld [vmem:[#allocation7] sm:$0xff]
        %v359 = vld [vmem:[#allocation7 + $0x8] sm:$0xff]
        %v360 = vld [vmem:[#allocation7 + $0x10] sm:$0xff]
        %v361 = vld [vmem:[#allocation7 + $0x18] sm:$0xff]
        %v362 = vld [vmem:[#allocation7 + $0x20] sm:$0xff]
        %v363 = vld [vmem:[#allocation7 + $0x28] sm:$0xff]
        %v364 = vld [vmem:[#allocation7 + $0x30] sm:$0xff]
        %v365 = vld [vmem:[#allocation7 + $0x38] sm:$0xff]
        %v366 = vld [vmem:[#allocation7 + $0x40] sm:$0xff]
        %v367 = vld [vmem:[#allocation7 + $0x48] sm:$0xff]
        %v368 = vld [vmem:[#allocation7 + $0x50] sm:$0xff]
        %v369 = vld [vmem:[#allocation7 + $0x58] sm:$0xff]
        %v370 = vld [vmem:[#allocation7 + $0x60] sm:$0xff]
        %v371 = vld [vmem:[#allocation7 + $0x68] sm:$0xff]
        %v372 = vld [vmem:[#allocation7 + $0x70] sm:$0xff]
        %v373 = vld [vmem:[#allocation7 + $0x78] sm:$0xff]
        %v374 = vld [vmem:[%s307] sm:$0xff]
        %v375 = vld [vmem:[#allocation8] sm:$0xff]
        %v376 = vld [vmem:[#allocation8 + $0x8] sm:$0xff]
        %v377 = vld [vmem:[#allocation8 + $0x10] sm:$0xff]
        %v378 = vld [vmem:[#allocation8 + $0x18] sm:$0xff]
        %v379 = vld [vmem:[#allocation8 + $0x20] sm:$0xff]
        %v380 = vld [vmem:[#allocation8 + $0x28] sm:$0xff]
        %v381 = vld [vmem:[#allocation8 + $0x30] sm:$0xff]
        %v382 = vld [vmem:[#allocation8 + $0x38] sm:$0xff]
        %v383 = vld [vmem:[#allocation8 + $0x40] sm:$0xff]
        %v384 = vld [vmem:[#allocation8 + $0x48] sm:$0xff]
        %v385 = vld [vmem:[#allocation8 + $0x50] sm:$0xff]
        %v386 = vld [vmem:[#allocation8 + $0x58] sm:$0xff]
        %v387 = vld [vmem:[#allocation8 + $0x60] sm:$0xff]
        %v388 = vld [vmem:[#allocation8 + $0x68] sm:$0xff]
        %v389 = vld [vmem:[#allocation8 + $0x70] sm:$0xff]
        %v390 = vld [vmem:[#allocation8 + $0x78] sm:$0xff]
        %391 = vmatpush.msra.mxu0 %v390
        %392 = vmatpush.msra.mxu0 %v389
        %393 = vmatpush.msra.mxu0 %v388
        %394 = vmatpush.msra.mxu0 %v387
        %395 = vmatpush.msra.mxu0 %v386
        %396 = vmatpush.msra.mxu0 %v385
        %397 = vmatpush.msra.mxu0 %v384
        %398 = vmatpush.msra.mxu0 %v383
        %399 = vmatpush.msra.mxu0 %v382
        %400 = vmatpush.msra.mxu0 %v381
        %401 = vmatpush.msra.mxu0 %v380
        %402 = vmatpush.msra.mxu0 %v379
        %403 = vmatpush.msra.mxu0 %v378
        %404 = vmatpush.msra.mxu0 %v377
        %405 = vmatpush.msra.mxu0 %v376
        %406 = vmatpush.msra.mxu0 %v375
        %407 = vmatmul.f32.gmra.mxu0 %v374
        %v408 = vpop.f32.mrf.mxu0
        %v409 = vadd.f32 0.0, %v408
        %410 = vdwg.mxu0
        %411 = vmatpush.msra.mxu0 %v373
        %412 = vmatpush.msra.mxu0 %v372
        %413 = vmatpush.msra.mxu0 %v371
        %414 = vmatpush.msra.mxu0 %v370
        %415 = vmatpush.msra.mxu0 %v369
        %416 = vmatpush.msra.mxu0 %v368
        %417 = vmatpush.msra.mxu0 %v367
        %418 = vmatpush.msra.mxu0 %v366
        %419 = vmatpush.msra.mxu0 %v365
        %420 = vmatpush.msra.mxu0 %v364
        %421 = vmatpush.msra.mxu0 %v363
        %422 = vmatpush.msra.mxu0 %v362
        %423 = vmatpush.msra.mxu0 %v361
        %424 = vmatpush.msra.mxu0 %v360
        %425 = vmatpush.msra.mxu0 %v359
        %426 = vmatpush.msra.mxu0 %v358
        %427 = vmatmul.f32.gmra.mxu0 %v357
        %v428 = vpop.f32.mrf.mxu0
        %v429 = vadd.f32 %v409, %v428
        %430 = vdwg.mxu0
        %v431 = vld [vmem:[#allocation10] sm:$0xff]
        %v432 = vld [vmem:[#allocation10 + $0x8] sm:$0xff]
        %v433 = vld [vmem:[#allocation10 + $0x10] sm:$0xff]
        %v434 = vld [vmem:[#allocation10 + $0x18] sm:$0xff]
        %v435 = vld [vmem:[#allocation10 + $0x20] sm:$0xff]
        %v436 = vld [vmem:[#allocation10 + $0x28] sm:$0xff]
        %v437 = vld [vmem:[#allocation10 + $0x30] sm:$0xff]
        %v438 = vld [vmem:[#allocation10 + $0x38] sm:$0xff]
        %v439 = vld [vmem:[#allocation10 + $0x40] sm:$0xff]
        %v440 = vld [vmem:[#allocation10 + $0x48] sm:$0xff]
        %v441 = vld [vmem:[#allocation10 + $0x50] sm:$0xff]
        %v442 = vld [vmem:[#allocation10 + $0x58] sm:$0xff]
        %v443 = vld [vmem:[#allocation10 + $0x60] sm:$0xff]
        %v444 = vld [vmem:[#allocation10 + $0x68] sm:$0xff]
        %v445 = vld [vmem:[#allocation10 + $0x70] sm:$0xff]
        %v446 = vld [vmem:[#allocation10 + $0x78] sm:$0xff]
        %v447 = vld [vmem:[#allocation10 + $0x80] sm:$0xff]
        %v448 = vld [vmem:[#allocation10 + $0x88] sm:$0xff]
        %v449 = vld [vmem:[#allocation10 + $0x90] sm:$0xff]
        %v450 = vld [vmem:[#allocation10 + $0x98] sm:$0xff]
        %v451 = vld [vmem:[#allocation10 + $0xa0] sm:$0xff]
        %v452 = vld [vmem:[#allocation10 + $0xa8] sm:$0xff]
        %v453 = vld [vmem:[#allocation10 + $0xb0] sm:$0xff]
        %v454 = vld [vmem:[#allocation10 + $0xb8] sm:$0xff]
        %v455 = vld [vmem:[#allocation10 + $0xc0] sm:$0xff]
        %v456 = vld [vmem:[#allocation10 + $0xc8] sm:$0xff]
        %v457 = vld [vmem:[#allocation10 + $0xd0] sm:$0xff]
        %v458 = vld [vmem:[#allocation10 + $0xd8] sm:$0xff]
        %v459 = vld [vmem:[#allocation10 + $0xe0] sm:$0xff]
        %v460 = vld [vmem:[#allocation10 + $0xe8] sm:$0xff]
        %v461 = vld [vmem:[#allocation10 + $0xf0] sm:$0xff]
        %v462 = vld [vmem:[#allocation10 + $0xf8] sm:$0xff]
        %v463 = vld [vmem:[#allocation10 + $0x100] sm:$0xff]
        %v464 = vld [vmem:[#allocation10 + $0x108] sm:$0xff]
        %v465 = vld [vmem:[#allocation10 + $0x110] sm:$0xff]
        %v466 = vld [vmem:[#allocation10 + $0x118] sm:$0xff]
        %v467 = vld [vmem:[#allocation10 + $0x120] sm:$0xff]
        %v468 = vld [vmem:[#allocation10 + $0x128] sm:$0xff]
        %v469 = vld [vmem:[#allocation10 + $0x130] sm:$0xff]
        %v470 = vld [vmem:[#allocation10 + $0x138] sm:$0xff]
        %v471 = vld [vmem:[#allocation10 + $0x140] sm:$0xff]
        %v472 = vld [vmem:[#allocation10 + $0x148] sm:$0xff]
        %v473 = vld [vmem:[#allocation10 + $0x150] sm:$0xff]
        %v474 = vld [vmem:[#allocation10 + $0x158] sm:$0xff]
        %v475 = vld [vmem:[#allocation10 + $0x160] sm:$0xff]
        %v476 = vld [vmem:[#allocation10 + $0x168] sm:$0xff]
        %v477 = vld [vmem:[#allocation10 + $0x170] sm:$0xff]
        %v478 = vld [vmem:[#allocation10 + $0x178] sm:$0xff]
        %v479 = vld [vmem:[%s5] sm:$0x7]
        %v481 = vperm.slane %v479, 0
        %v482 = vperm.slane %v479, 1
        %v483 = vperm.slane %v479, 2
        %487 = vmatpush.msra.mxu0 %v476
        %488 = vmatpush.msra.mxu0 %v473
        %489 = vmatpush.msra.mxu0 %v470
        %490 = vmatpush.msra.mxu0 %v467
        %491 = vmatpush.msra.mxu0 %v464
        %492 = vmatpush.msra.mxu0 %v461
        %493 = vmatpush.msra.mxu0 %v458
        %494 = vmatpush.msra.mxu0 %v455
        %495 = vmatpush.msra.mxu0 %v452
        %496 = vmatpush.msra.mxu0 %v449
        %497 = vmatpush.msra.mxu0 %v446
        %498 = vmatpush.msra.mxu0 %v443
        %499 = vmatpush.msra.mxu0 %v440
        %500 = vmatpush.msra.mxu0 %v437
        %501 = vmatpush.msra.mxu0 %v434
        %502 = vmatpush.msra.mxu0 %v431
        %503 = vmatmul.f32.gmra.mxu0 %v429
        %v504 = vpop.f32.mrf.mxu0
        %v505 = vadd.f32 %v481, %v504
        %506 = vdwg.mxu0
        %507 = vmatpush.msra.mxu0 %v477
        %508 = vmatpush.msra.mxu0 %v474
        %509 = vmatpush.msra.mxu0 %v471
        %510 = vmatpush.msra.mxu0 %v468
        %511 = vmatpush.msra.mxu0 %v465
        %512 = vmatpush.msra.mxu0 %v462
        %513 = vmatpush.msra.mxu0 %v459
        %514 = vmatpush.msra.mxu0 %v456
        %515 = vmatpush.msra.mxu0 %v453
        %516 = vmatpush.msra.mxu0 %v450
        %517 = vmatpush.msra.mxu0 %v447
        %518 = vmatpush.msra.mxu0 %v444
        %519 = vmatpush.msra.mxu0 %v441
        %520 = vmatpush.msra.mxu0 %v438
        %521 = vmatpush.msra.mxu0 %v435
        %522 = vmatpush.msra.mxu0 %v432
        %523 = vmatmul.f32.gmra.mxu0 %v429
        %v524 = vpop.f32.mrf.mxu0
        %v525 = vadd.f32 %v482, %v524
        %526 = vdwg.mxu0
        %527 = vmatpush.msra.mxu0 %v478
        %528 = vmatpush.msra.mxu0 %v475
        %529 = vmatpush.msra.mxu0 %v472
        %530 = vmatpush.msra.mxu0 %v469
        %531 = vmatpush.msra.mxu0 %v466
        %532 = vmatpush.msra.mxu0 %v463
        %533 = vmatpush.msra.mxu0 %v460
        %534 = vmatpush.msra.mxu0 %v457
        %535 = vmatpush.msra.mxu0 %v454
        %536 = vmatpush.msra.mxu0 %v451
        %537 = vmatpush.msra.mxu0 %v448
        %538 = vmatpush.msra.mxu0 %v445
        %539 = vmatpush.msra.mxu0 %v442
        %540 = vmatpush.msra.mxu0 %v439
        %541 = vmatpush.msra.mxu0 %v436
        %542 = vmatpush.msra.mxu0 %v433
        %543 = vmatmul.f32.gmra.mxu0 %v429
        %v544 = vpop.f32.mrf.mxu0
        %v545 = vadd.f32 %v483, %v544
        %546 = vdwg.mxu0
        %v547 = vmul.f32 %v429, %v505
        %v548 = vadd.f32 %v547, %v429
        %v549 = vmul.f32 %v548, %v525
        %v550 = vadd.f32 %v549, %v429
        %v551 = vmul.f32 %v550, %v545
        %v552 = vadd.f32 %v551, %v429
        %553 = vst [vmem:[%s356] sm:$0xff] %v552
        %s554 = sand.u32 %s171, 1
        %s555 = scalar_lea.sflag [#allocation4], %s554
        %s556 = sand.u32 %s171, 1
        %s557 = smul.addr %s556, 8
        %s558 = scalar_lea.vmem [#allocation11], %s557
        // Predicated region
        $region65: #{tpu_custom_call.1} parent=43 // pred_check
          %p559 = pneg %p181
        $region66: #{tpu_custom_call.1} parent=43 // pred_check_branch
          %561 = sbr.rel (%p559) target = $region68
        $region67: #{tpu_custom_call.1} parent=43 // pred_region
          %563 = vsyncadd %s555, 0
          %s564 = smul.addr %s27, 8
          %s565 = scalar_lea.hbm %s6, %s564
          %s567 = sshll.u32 %s558, 4
          %s568 = int_to_ptr.vmem [resolvable:$true] %s567
          %s569 = sshll.u32 %s565, 4
          %s570 = int_to_ptr.hbm [resolvable:$true] %s569
          %572 = dma.vmem_to_hbm [thread:$0]  %s568, 128, %s570, %s555
        $region68: #{tpu_custom_call.1} parent=43 // pred_fallthru
          _
      $region44: #{tpu_custom_call.1} parent=5 // pred_fallthru
        _
      %p573 = scmp.le.s32.totalorder 2, %s22
      // Predicated region
      $region69: #{tpu_custom_call.1} parent=5 // pred_check
        %p574 = pneg %p573
      $region70: #{tpu_custom_call.1} parent=5 // pred_check_branch
        %576 = sbr.rel (%p574) target = $region72
      $region71: #{tpu_custom_call.1} parent=5 // pred_region
        %s577 = ssub.s32 %s22, 2
        // Predicated region
        $region73: #{tpu_custom_call.1} parent=71 // pred_check
          %p578 = pneg %p187
        $region74: #{tpu_custom_call.1} parent=71 // pred_check_branch
          %580 = sbr.rel (%p578) target = $region76
        $region75: #{tpu_custom_call.1} parent=71 // pred_region
          %s581 = sand.u32 %s172, 1
          %s582 = scalar_lea.sflag [#allocation4], %s581
          %s583 = sand.u32 %s172, 1
          %s584 = smul.addr %s583, 8
          %s585 = scalar_lea.vmem [#allocation11], %s584
          %587 = dma.done %s582, 128
        $region76: #{tpu_custom_call.1} parent=71 // pred_fallthru
          _
      $region72: #{tpu_custom_call.1} parent=5 // pred_fallthru
        _
    $region6: #{tpu_custom_call.1} parent=1 // loop_footer
      %s26 = sadd.s32 1, %s22
    $region7: #{tpu_custom_call.1} parent=1 // loop_footer_branch
      %21 = sbr.rel target = $region3
    $region8: #{tpu_custom_call.1} parent=1 // loop_exit
      _
    %588 = vsyncpa [#allocation3], 1
    %s589 = scalar_lea.sflag [#allocation3], 1
    %590 = vsyncpa %s589, 1
    %591 = vsyncpa [#allocation6], 1
    %s592 = scalar_lea.sflag [#allocation6], 1
    %593 = vsyncpa %s592, 1
    %594 = vsyncpa [#allocation9], 1
    %595 = vsyncpa [#allocation4], 1
    %s596 = scalar_lea.sflag [#allocation4], 1
    %597 = vsyncpa %s596, 1

// kernel: tpu_custom_call.1
$region0: #{tpu_custom_call.1}
  #allocation0 [shape = 'u32[]', space=smem, size = 0x4, offset = 0x4, fixed_abs, tag = 'smem constant byte address 0x4 - core index']
  #allocation1 [shape = 'u32[72,128]{1,0:T(1,128)}', space=vmem, size = 0x9000, scoped, tag = 'internal scratch']
  %s0 = inlined_call_operand.hbm [shape: f32[16,128], index: 0, kind: input, shape index: {}]
  %s1 = inlined_call_operand.hbm [shape: f32[16,128], index: 1, kind: input, shape index: {}]
  %s2 = inlined_call_operand.hbm [shape: f32[128,128], index: 2, kind: input, shape index: {}]
  %s3 = inlined_call_operand.hbm [shape: f32[128,128], index: 3, kind: input, shape index: {}]
  %s4 = inlined_call_operand.hbm [shape: f32[128,384], index: 4, kind: input, shape index: {}]
  %s5 = inlined_call_operand.vmem [shape: f32[1,384], index: 5, kind: input, shape index: {}]
  %s6 = inlined_call_operand.hbm [shape: f32[16,128], index: 6, kind: output, shape index: {}]
  %s7 = sld [smem:[#allocation0]]
  $region77: #{tpu_custom_call.1} parent=0
    _
  %s9 = ssub.s32 1, %s7
  %s10 = scalar_select 0, %s9, %s7
  $region1: #{tpu_custom_call.1} parent=0
    #allocation2 [shape = 'u8[8192]{0}', space=vmem, size = 0x2000, scoped, tag = 'input window, operand 0']
    #allocation3 [shape = 's32[2]{0}', space=sflag, size = 0x8, scoped, tag = 'scoped memory for tpu_custom_call.1']
    #allocation4 [shape = 's32[2]{0}', space=sflag, size = 0x8, scoped, tag = 'scoped memory for tpu_custom_call.1']
    #allocation5 [shape = 'u8[8192]{0}', space=vmem, size = 0x2000, scoped, tag = 'input window, operand 1']
    #allocation6 [shape = 's32[2]{0}', space=sflag, size = 0x8, scoped, tag = 'scoped memory for tpu_custom_call.1']
    #allocation7 [shape = 'u8[65536]{0}', space=vmem, size = 0x10000, scoped, tag = 'input window, operand 2, single buffered']
    #allocation8 [shape = 'u8[65536]{0}', space=vmem, size = 0x10000, scoped, tag = 'input window, operand 3, single buffered']
    #allocation9 [shape = 's32[1]{0}', space=sflag, size = 0x4, scoped, tag = 'scoped memory for tpu_custom_call.1']
    #allocation10 [shape = 'u8[196608]{0}', space=vmem, size = 0x30000, scoped, tag = 'input window, operand 4, single buffered']
    #allocation11 [shape = 'u8[8192]{0}', space=vmem, size = 0x2000, scoped, tag = 'output window, operand 0']
    %11 = vsyncpa [#allocation3], 0
    %s12 = scalar_lea.sflag [#allocation3], 1
    %13 = vsyncpa %s12, 0
    %14 = vsyncpa [#allocation6], 0
    %s15 = scalar_lea.sflag [#allocation6], 1
    %16 = vsyncpa %s15, 0
    %17 = vsyncpa [#allocation9], 0
    %18 = vsyncpa [#allocation4], 0
    %s19 = scalar_lea.sflag [#allocation4], 1
    %20 = vsyncpa %s19, 0
    loop: start=0, step=1, limit=4
    $region2: #{tpu_custom_call.1} parent=1 // loop_pre_header
      _
    $region3: #{tpu_custom_call.1} parent=1 // loop_header
      %s22 = sphi 0, %s26
      %p23 = scmp.ge.s32.totalorder %s22, 4
      %s32 = sphi 0, %s34
      %s35 = sphi 0, %s32
      %s36 = sphi 0, %s35
      %s52 = sphi 0, %s36
      %s58 = sphi 0, %s60
      %s61 = sphi 0, %s58
      %s62 = sphi 0, %s61
      %s78 = sphi 0, %s62
      %s82 = sphi 0, %s82
      %s84 = sphi 0, %s82
      %s85 = sphi 0, %s84
      %s99 = sphi 0, %s85
      %s103 = sphi 0, %s103
      %s105 = sphi 0, %s103
      %s106 = sphi 0, %s105
      %s120 = sphi 0, %s106
      %s124 = sphi 0, %s124
      %s126 = sphi 0, %s124
      %s127 = sphi 0, %s126
      %s141 = sphi 0, %s127
      %s145 = sphi 0, %s145
      %s147 = sphi 0, %s145
      %s148 = sphi 0, %s147
      %s162 = sphi 0, %s148
      %s168 = sphi 0, %s170
      %s171 = sphi 0, %s168
      %s172 = sphi 0, %s171
      %s188 = sphi 0, %s172
    $region4: #{tpu_custom_call.1} parent=1 // loop_header_branch
      %25 = sbr.rel (%p23) target = $region8
    $region5: #{tpu_custom_call.1} parent=1 // loop_body
      %s27 = ssub.s32 %s22, 1
      %s28 = ssub.s32 %s22, 2
      %s29 = sadd.s32 %s22, 1
      %s30 = ssub.s32 %s22, %s29
      %p31 = scmp.eq.s32.totalorder %s30, 0
      %s33 = sadd.s32 %s32, 1
      %s34 = scalar_select %p31, %s32, %s33
      %p37 = pneg %p31
      %p38 = scmp.eq.s32.totalorder %s22, 1
      %p39 = por %p37, %p38
      %p40 = scmp.ne.s32.totalorder %s32, %s35
      %p41 = scmp.eq.s32.totalorder %s22, 0
      %p42 = por %p40, %p41
      %p43 = scmp.ne.s32.totalorder %s32, %s35
      %p44 = scmp.eq.s32.totalorder %s27, 1
      %p45 = por %p43, %p44
      %p46 = scmp.ne.s32.totalorder %s35, %s36
      %p47 = scmp.eq.s32.totalorder %s27, 0
      %p48 = por %p46, %p47
      %p49 = scmp.ne.s32.totalorder %s35, %s36
      %p50 = scmp.eq.s32.totalorder %s28, 1
      %p51 = por %p49, %p50
      %p53 = scmp.ne.s32.totalorder %s36, %s52
      %p54 = scmp.eq.s32.totalorder %s28, 0
      %p55 = por %p53, %p54
      %s56 = ssub.s32 %s22, %s29
      %p57 = scmp.eq.s32.totalorder %s56, 0
      %s59 = sadd.s32 %s58, 1
      %s60 = scalar_select %p57, %s58, %s59
      %p63 = pneg %p57
      %p64 = scmp.eq.s32.totalorder %s22, 1
      %p65 = por %p63, %p64
      %p66 = scmp.ne.s32.totalorder %s58, %s61
      %p67 = scmp.eq.s32.totalorder %s22, 0
      %p68 = por %p66, %p67
      %p69 = scmp.ne.s32.totalorder %s58, %s61
      %p70 = scmp.eq.s32.totalorder %s27, 1
      %p71 = por %p69, %p70
      %p72 = scmp.ne.s32.totalorder %s61, %s62
      %p73 = scmp.eq.s32.totalorder %s27, 0
      %p74 = por %p72, %p73
      %p75 = scmp.ne.s32.totalorder %s61, %s62
      %p76 = scmp.eq.s32.totalorder %s28, 1
      %p77 = por %p75, %p76
      %p79 = scmp.ne.s32.totalorder %s62, %s78
      %p80 = scmp.eq.s32.totalorder %s28, 0
      %p81 = por %p79, %p80
      %s83 = sadd.s32 %s82, 1
      %p86 = scmp.eq.s32.totalorder %s22, 1
      %p87 = scmp.ne.s32.totalorder %s82, %s84
      %p88 = scmp.eq.s32.totalorder %s22, 0
      %p89 = por %p87, %p88
      %p90 = scmp.ne.s32.totalorder %s82, %s84
      %p91 = scmp.eq.s32.totalorder %s27, 1
      %p92 = por %p90, %p91
      %p93 = scmp.ne.s32.totalorder %s84, %s85
      %p94 = scmp.eq.s32.totalorder %s27, 0
      %p95 = por %p93, %p94
      %p96 = scmp.ne.s32.totalorder %s84, %s85
      %p97 = scmp.eq.s32.totalorder %s28, 1
      %p98 = por %p96, %p97
      %p100 = scmp.ne.s32.totalorder %s85, %s99
      %p101 = scmp.eq.s32.totalorder %s28, 0
      %p102 = por %p100, %p101
      %s104 = sadd.s32 %s103, 1
      %p107 = scmp.eq.s32.totalorder %s22, 1
      %p108 = scmp.ne.s32.totalorder %s103, %s105
      %p109 = scmp.eq.s32.totalorder %s22, 0
      %p110 = por %p108, %p109
      %p111 = scmp.ne.s32.totalorder %s103, %s105
      %p112 = scmp.eq.s32.totalorder %s27, 1
      %p113 = por %p111, %p112
      %p114 = scmp.ne.s32.totalorder %s105, %s106
      %p115 = scmp.eq.s32.totalorder %s27, 0
      %p116 = por %p114, %p115
      %p117 = scmp.ne.s32.totalorder %s105, %s106
      %p118 = scmp.eq.s32.totalorder %s28, 1
      %p119 = por %p117, %p118
      %p121 = scmp.ne.s32.totalorder %s106, %s120
      %p122 = scmp.eq.s32.totalorder %s28, 0
      %p123 = por %p121, %p122
      %s125 = sadd.s32 %s124, 1
      %p128 = scmp.eq.s32.totalorder %s22, 1
      %p129 = scmp.ne.s32.totalorder %s124, %s126
      %p130 = scmp.eq.s32.totalorder %s22, 0
      %p131 = por %p129, %p130
      %p132 = scmp.ne.s32.totalorder %s124, %s126
      %p133 = scmp.eq.s32.totalorder %s27, 1
      %p134 = por %p132, %p133
      %p135 = scmp.ne.s32.totalorder %s126, %s127
      %p136 = scmp.eq.s32.totalorder %s27, 0
      %p137 = por %p135, %p136
      %p138 = scmp.ne.s32.totalorder %s126, %s127
      %p139 = scmp.eq.s32.totalorder %s28, 1
      %p140 = por %p138, %p139
      %p142 = scmp.ne.s32.totalorder %s127, %s141
      %p143 = scmp.eq.s32.totalorder %s28, 0
      %p144 = por %p142, %p143
      %s146 = sadd.s32 %s145, 1
      %p149 = scmp.eq.s32.totalorder %s22, 1
      %p150 = scmp.ne.s32.totalorder %s145, %s147
      %p151 = scmp.eq.s32.totalorder %s22, 0
      %p152 = por %p150, %p151
      %p153 = scmp.ne.s32.totalorder %s145, %s147
      %p154 = scmp.eq.s32.totalorder %s27, 1
      %p155 = por %p153, %p154
      %p156 = scmp.ne.s32.totalorder %s147, %s148
      %p157 = scmp.eq.s32.totalorder %s27, 0
      %p158 = por %p156, %p157
      %p159 = scmp.ne.s32.totalorder %s147, %s148
      %p160 = scmp.eq.s32.totalorder %s28, 1
      %p161 = por %p159, %p160
      %p163 = scmp.ne.s32.totalorder %s148, %s162
      %p164 = scmp.eq.s32.totalorder %s28, 0
      %p165 = por %p163, %p164
      %s166 = ssub.s32 %s22, %s29
      %p167 = scmp.eq.s32.totalorder %s166, 0
      %s169 = sadd.s32 %s168, 1
      %s170 = scalar_select %p167, %s168, %s169
      %p173 = pneg %p167
      %p174 = scmp.eq.s32.totalorder %s22, 1
      %p175 = por %p173, %p174
      %p176 = scmp.ne.s32.totalorder %s168, %s171
      %p177 = scmp.eq.s32.totalorder %s22, 0
      %p178 = por %p176, %p177
      %p179 = scmp.ne.s32.totalorder %s168, %s171
      %p180 = scmp.eq.s32.totalorder %s27, 1
      %p181 = por %p179, %p180
      %p182 = scmp.ne.s32.totalorder %s171, %s172
      %p183 = scmp.eq.s32.totalorder %s27, 0
      %p184 = por %p182, %p183
      %p185 = scmp.ne.s32.totalorder %s171, %s172
      %p186 = scmp.eq.s32.totalorder %s28, 1
      %p187 = por %p185, %p186
      %p189 = scmp.ne.s32.totalorder %s172, %s188
      %p190 = scmp.eq.s32.totalorder %s28, 0
      %p191 = por %p189, %p190
      %p192 = scmp.le.s32.totalorder 1, %s22
      %p193 = scmp.lt.s32.totalorder %s22, 3
      %p194 = pnand %p192, %p193
      %p195 = pneg %p194
      // Predicated region
      $region9: #{tpu_custom_call.1} parent=5 // pred_check
        _
      $region10: #{tpu_custom_call.1} parent=5 // pred_check_branch
        %197 = sbr.rel (%p194) target = $region12
      $region11: #{tpu_custom_call.1} parent=5 // pred_region
        %s198 = ssub.s32 %s22, 1
        // Predicated region
        $region13: #{tpu_custom_call.1} parent=11 // pred_check
          %p199 = pneg %p95
        $region14: #{tpu_custom_call.1} parent=11 // pred_check_branch
          %201 = sbr.rel (%p199) target = $region16
        $region15: #{tpu_custom_call.1} parent=11 // pred_region
          %203 = vsyncadd [#allocation6], 0
          %s204 = sshll.u32 %s2, 4
          %s205 = int_to_ptr.hbm [resolvable:$true] %s204
          %s206 = sshll.u32 [#allocation7], 4
          %s207 = int_to_ptr.vmem [resolvable:$true] %s206
          %212 = dma.hbm_to_vmem [thread:$0]  %s205, 2048, %s207, [#allocation6], 128, 128, 8
        $region16: #{tpu_custom_call.1} parent=11 // pred_fallthru
          _
        // Predicated region
        $region17: #{tpu_custom_call.1} parent=11 // pred_check
          %p213 = pneg %p116
        $region18: #{tpu_custom_call.1} parent=11 // pred_check_branch
          %215 = sbr.rel (%p213) target = $region20
        $region19: #{tpu_custom_call.1} parent=11 // pred_region
          %217 = vsyncadd [#allocation9], 0
          %s218 = sshll.u32 %s3, 4
          %s219 = int_to_ptr.hbm [resolvable:$true] %s218
          %s220 = sshll.u32 [#allocation8], 4
          %s221 = int_to_ptr.vmem [resolvable:$true] %s220
          %226 = dma.hbm_to_vmem [thread:$0]  %s219, 2048, %s221, [#allocation9], 128, 128, 8
        $region20: #{tpu_custom_call.1} parent=11 // pred_fallthru
          _
        // Predicated region
        $region21: #{tpu_custom_call.1} parent=11 // pred_check
          %p227 = pneg %p137
        $region22: #{tpu_custom_call.1} parent=11 // pred_check_branch
          %229 = sbr.rel (%p227) target = $region24
        $region23: #{tpu_custom_call.1} parent=11 // pred_region
          %231 = vsyncadd [#allocation9], 0
          %s232 = sshll.u32 %s4, 4
          %s233 = int_to_ptr.hbm [resolvable:$true] %s232
          %s234 = sshll.u32 [#allocation10], 4
          %s235 = int_to_ptr.vmem [resolvable:$true] %s234
          %240 = dma.hbm_to_vmem [thread:$0]  %s233, 6144, %s235, [#allocation9], 384, 384, 24
        $region24: #{tpu_custom_call.1} parent=11 // pred_fallthru
          _
        // Predicated region
        $region25: #{tpu_custom_call.1} parent=11 // pred_check
          %p241 = pneg %p158
        $region26: #{tpu_custom_call.1} parent=11 // pred_check_branch
          %243 = sbr.rel (%p241) target = $region28
        $region27: #{tpu_custom_call.1} parent=11 // pred_region
          _
        $region28: #{tpu_custom_call.1} parent=11 // pred_fallthru
          _
      $region12: #{tpu_custom_call.1} parent=5 // pred_fallthru
        _
      %p244 = scmp.lt.s32.totalorder %s22, 2
      // Predicated region
      $region29: #{tpu_custom_call.1} parent=5 // pred_check
        %p245 = pneg %p244
      $region30: #{tpu_custom_call.1} parent=5 // pred_check_branch
        %247 = sbr.rel (%p245) target = $region32
      $region31: #{tpu_custom_call.1} parent=5 // pred_region
        // Predicated region
        $region33: #{tpu_custom_call.1} parent=31 // pred_check
          %p248 = pneg %p42
        $region34: #{tpu_custom_call.1} parent=31 // pred_check_branch
          %250 = sbr.rel (%p248) target = $region36
        $region35: #{tpu_custom_call.1} parent=31 // pred_region
          %s251 = sand.u32 %s32, 1
          %s252 = scalar_lea.sflag [#allocation3], %s251
          %s253 = sand.u32 %s32, 1
          %s254 = smul.addr %s253, 8
          %s255 = scalar_lea.vmem [#allocation2], %s254
          %257 = vsyncadd %s252, 0
          %s258 = smul.addr %s22, 8
          %s259 = scalar_lea.hbm %s0, %s258
          %s261 = sshll.u32 %s259, 4
          %s262 = int_to_ptr.hbm [resolvable:$true] %s261
          %s263 = sshll.u32 %s255, 4
          %s264 = int_to_ptr.vmem [resolvable:$true] %s263
          %266 = dma.hbm_to_vmem [thread:$0]  %s262, 128, %s264, %s252
        $region36: #{tpu_custom_call.1} parent=31 // pred_fallthru
          _
        // Predicated region
        $region37: #{tpu_custom_call.1} parent=31 // pred_check
          %p267 = pneg %p68
        $region38: #{tpu_custom_call.1} parent=31 // pred_check_branch
          %269 = sbr.rel (%p267) target = $region40
        $region39: #{tpu_custom_call.1} parent=31 // pred_region
          %s270 = sand.u32 %s22, 1
          %s271 = scalar_lea.sflag [#allocation6], %s270
          %s272 = sand.u32 %s58, 1
          %s273 = smul.addr %s272, 8
          %s274 = scalar_lea.vmem [#allocation5], %s273
          %276 = vsyncadd %s271, 0
          %s277 = smul.addr %s22, 8
          %s278 = scalar_lea.hbm %s1, %s277
          %s280 = sshll.u32 %s278, 4
          %s281 = int_to_ptr.hbm [resolvable:$true] %s280
          %s282 = sshll.u32 %s274, 4
          %s283 = int_to_ptr.vmem [resolvable:$true] %s282
          %285 = dma.hbm_to_vmem [thread:$0]  %s281, 128, %s283, %s271
        $region40: #{tpu_custom_call.1} parent=31 // pred_fallthru
          _
      $region32: #{tpu_custom_call.1} parent=5 // pred_fallthru
        _
      %p286 = scmp.le.s32.totalorder 1, %s22
      %p287 = scmp.lt.s32.totalorder %s22, 3
      %p288 = pnand %p286, %p287
      %p289 = pneg %p288
      // Predicated region
      $region41: #{tpu_custom_call.1} parent=5 // pred_check
        _
      $region42: #{tpu_custom_call.1} parent=5 // pred_check_branch
        %291 = sbr.rel (%p288) target = $region44
      $region43: #{tpu_custom_call.1} parent=5 // pred_region
        %s292 = ssub.s32 %s22, 1
        %s293 = sand.u32 %s35, 1
        %s294 = scalar_lea.sflag [#allocation3], %s293
        %s295 = sand.u32 %s35, 1
        %s296 = smul.addr %s295, 8
        %s297 = scalar_lea.vmem [#allocation2], %s296
        // Predicated region
        $region45: #{tpu_custom_call.1} parent=43 // pred_check
          %p298 = pneg %p48
        $region46: #{tpu_custom_call.1} parent=43 // pred_check_branch
          %300 = sbr.rel (%p298) target = $region48
        $region47: #{tpu_custom_call.1} parent=43 // pred_region
          %302 = dma.done %s294, 128
        $region48: #{tpu_custom_call.1} parent=43 // pred_fallthru
          _
        %s303 = sand.u32 %s27, 1
        %s304 = scalar_lea.sflag [#allocation6], %s303
        %s305 = sand.u32 %s61, 1
        %s306 = smul.addr %s305, 8
        %s307 = scalar_lea.vmem [#allocation5], %s306
        // Predicated region
        $region49: #{tpu_custom_call.1} parent=43 // pred_check
          %p308 = pneg %p74
        $region50: #{tpu_custom_call.1} parent=43 // pred_check_branch
          %310 = sbr.rel (%p308) target = $region52
        $region51: #{tpu_custom_call.1} parent=43 // pred_region
          %312 = dma.done %s304, 128
        $region52: #{tpu_custom_call.1} parent=43 // pred_fallthru
          _
        // Predicated region
        $region53: #{tpu_custom_call.1} parent=43 // pred_check
          %p313 = pneg %p95
        $region54: #{tpu_custom_call.1} parent=43 // pred_check_branch
          %315 = sbr.rel (%p313) target = $region56
        $region55: #{tpu_custom_call.1} parent=43 // pred_region
          %317 = dma.done [#allocation6], 2048
        $region56: #{tpu_custom_call.1} parent=43 // pred_fallthru
          _
        // Predicated region
        $region57: #{tpu_custom_call.1} parent=43 // pred_check
          %p318 = pneg %p116
        $region58: #{tpu_custom_call.1} parent=43 // pred_check_branch
          %320 = sbr.rel (%p318) target = $region60
        $region59: #{tpu_custom_call.1} parent=43 // pred_region
          %322 = dma.done [#allocation9], 2048
        $region60: #{tpu_custom_call.1} parent=43 // pred_fallthru
          _
        // Predicated region
        $region61: #{tpu_custom_call.1} parent=43 // pred_check
          %p323 = pneg %p137
        $region62: #{tpu_custom_call.1} parent=43 // pred_check_branch
          %325 = sbr.rel (%p323) target = $region64
        $region63: #{tpu_custom_call.1} parent=43 // pred_region
          %327 = dma.done [#allocation9], 6144
        $region64: #{tpu_custom_call.1} parent=43 // pred_fallthru
          _
        %s328 = sand.u32 %s35, 1
        %s329 = scalar_lea.sflag [#allocation3], %s328
        %s330 = sand.u32 %s35, 1
        %s331 = smul.addr %s330, 8
        %s332 = scalar_lea.vmem [#allocation2], %s331
        %p333 = pneg %p48
        %p334 = pneg %p45
        %s335 = sand.u32 %s27, 1
        %s336 = scalar_lea.sflag [#allocation6], %s335
        %s337 = sand.u32 %s61, 1
        %s338 = smul.addr %s337, 8
        %s339 = scalar_lea.vmem [#allocation5], %s338
        %p340 = pneg %p74
        %p341 = pneg %p71
        %p342 = pneg %p95
        %p343 = pneg %p92
        %p344 = pneg %p116
        %p345 = pneg %p113
        %p346 = pneg %p137
        %p347 = pneg %p134
        %p348 = pneg %p158
        %p349 = pneg %p155
        %p350 = pneg %p184
        %p351 = pneg %p181
        %s352 = sand.u32 %s171, 1
        %s353 = scalar_lea.sflag [#allocation4], %s352
        %s354 = sand.u32 %s171, 1
        %s355 = smul.addr %s354, 8
        %s356 = scalar_lea.vmem [#allocation11], %s355
        %v357 = vld [vmem:[%s297] sm:$0xff]
        %v358 = vld [vmem:[#allocation7] sm:$0xff]
        %v359 = vld [vmem:[#allocation7 + $0x8] sm:$0xff]
        %v360 = vld [vmem:[#allocation7 + $0x10] sm:$0xff]
        %v361 = vld [vmem:[#allocation7 + $0x18] sm:$0xff]
        %v362 = vld [vmem:[#allocation7 + $0x20] sm:$0xff]
        %v363 = vld [vmem:[#allocation7 + $0x28] sm:$0xff]
        %v364 = vld [vmem:[#allocation7 + $0x30] sm:$0xff]
        %v365 = vld [vmem:[#allocation7 + $0x38] sm:$0xff]
        %v366 = vld [vmem:[#allocation7 + $0x40] sm:$0xff]
        %v367 = vld [vmem:[#allocation7 + $0x48] sm:$0xff]
        %v368 = vld [vmem:[#allocation7 + $0x50] sm:$0xff]
        %v369 = vld [vmem:[#allocation7 + $0x58] sm:$0xff]
        %v370 = vld [vmem:[#allocation7 + $0x60] sm:$0xff]
        %v371 = vld [vmem:[#allocation7 + $0x68] sm:$0xff]
        %v372 = vld [vmem:[#allocation7 + $0x70] sm:$0xff]
        %v373 = vld [vmem:[#allocation7 + $0x78] sm:$0xff]
        %v374 = vld [vmem:[%s307] sm:$0xff]
        %v375 = vld [vmem:[#allocation8] sm:$0xff]
        %v376 = vld [vmem:[#allocation8 + $0x8] sm:$0xff]
        %v377 = vld [vmem:[#allocation8 + $0x10] sm:$0xff]
        %v378 = vld [vmem:[#allocation8 + $0x18] sm:$0xff]
        %v379 = vld [vmem:[#allocation8 + $0x20] sm:$0xff]
        %v380 = vld [vmem:[#allocation8 + $0x28] sm:$0xff]
        %v381 = vld [vmem:[#allocation8 + $0x30] sm:$0xff]
        %v382 = vld [vmem:[#allocation8 + $0x38] sm:$0xff]
        %v383 = vld [vmem:[#allocation8 + $0x40] sm:$0xff]
        %v384 = vld [vmem:[#allocation8 + $0x48] sm:$0xff]
        %v385 = vld [vmem:[#allocation8 + $0x50] sm:$0xff]
        %v386 = vld [vmem:[#allocation8 + $0x58] sm:$0xff]
        %v387 = vld [vmem:[#allocation8 + $0x60] sm:$0xff]
        %v388 = vld [vmem:[#allocation8 + $0x68] sm:$0xff]
        %v389 = vld [vmem:[#allocation8 + $0x70] sm:$0xff]
        %v390 = vld [vmem:[#allocation8 + $0x78] sm:$0xff]
        %391 = vmatpush.msra.mxu0 %v390
        %392 = vmatpush.msra.mxu0 %v389
        %393 = vmatpush.msra.mxu0 %v388
        %394 = vmatpush.msra.mxu0 %v387
        %395 = vmatpush.msra.mxu0 %v386
        %396 = vmatpush.msra.mxu0 %v385
        %397 = vmatpush.msra.mxu0 %v384
        %398 = vmatpush.msra.mxu0 %v383
        %399 = vmatpush.msra.mxu0 %v382
        %400 = vmatpush.msra.mxu0 %v381
        %401 = vmatpush.msra.mxu0 %v380
        %402 = vmatpush.msra.mxu0 %v379
        %403 = vmatpush.msra.mxu0 %v378
        %404 = vmatpush.msra.mxu0 %v377
        %405 = vmatpush.msra.mxu0 %v376
        %406 = vmatpush.msra.mxu0 %v375
        %407 = vmatmul.f32.gmra.mxu0 %v374
        %v408 = vpop.f32.mrf.mxu0
        %v409 = vadd.f32 0.0, %v408
        %410 = vdwg.mxu0
        %411 = vmatpush.msra.mxu0 %v373
        %412 = vmatpush.msra.mxu0 %v372
        %413 = vmatpush.msra.mxu0 %v371
        %414 = vmatpush.msra.mxu0 %v370
        %415 = vmatpush.msra.mxu0 %v369
        %416 = vmatpush.msra.mxu0 %v368
        %417 = vmatpush.msra.mxu0 %v367
        %418 = vmatpush.msra.mxu0 %v366
        %419 = vmatpush.msra.mxu0 %v365
        %420 = vmatpush.msra.mxu0 %v364
        %421 = vmatpush.msra.mxu0 %v363
        %422 = vmatpush.msra.mxu0 %v362
        %423 = vmatpush.msra.mxu0 %v361
        %424 = vmatpush.msra.mxu0 %v360
        %425 = vmatpush.msra.mxu0 %v359
        %426 = vmatpush.msra.mxu0 %v358
        %427 = vmatmul.f32.gmra.mxu0 %v357
        %v428 = vpop.f32.mrf.mxu0
        %v429 = vadd.f32 %v409, %v428
        %430 = vdwg.mxu0
        %v431 = vld [vmem:[#allocation10] sm:$0xff]
        %v432 = vld [vmem:[#allocation10 + $0x8] sm:$0xff]
        %v433 = vld [vmem:[#allocation10 + $0x10] sm:$0xff]
        %v434 = vld [vmem:[#allocation10 + $0x18] sm:$0xff]
        %v435 = vld [vmem:[#allocation10 + $0x20] sm:$0xff]
        %v436 = vld [vmem:[#allocation10 + $0x28] sm:$0xff]
        %v437 = vld [vmem:[#allocation10 + $0x30] sm:$0xff]
        %v438 = vld [vmem:[#allocation10 + $0x38] sm:$0xff]
        %v439 = vld [vmem:[#allocation10 + $0x40] sm:$0xff]
        %v440 = vld [vmem:[#allocation10 + $0x48] sm:$0xff]
        %v441 = vld [vmem:[#allocation10 + $0x50] sm:$0xff]
        %v442 = vld [vmem:[#allocation10 + $0x58] sm:$0xff]
        %v443 = vld [vmem:[#allocation10 + $0x60] sm:$0xff]
        %v444 = vld [vmem:[#allocation10 + $0x68] sm:$0xff]
        %v445 = vld [vmem:[#allocation10 + $0x70] sm:$0xff]
        %v446 = vld [vmem:[#allocation10 + $0x78] sm:$0xff]
        %v447 = vld [vmem:[#allocation10 + $0x80] sm:$0xff]
        %v448 = vld [vmem:[#allocation10 + $0x88] sm:$0xff]
        %v449 = vld [vmem:[#allocation10 + $0x90] sm:$0xff]
        %v450 = vld [vmem:[#allocation10 + $0x98] sm:$0xff]
        %v451 = vld [vmem:[#allocation10 + $0xa0] sm:$0xff]
        %v452 = vld [vmem:[#allocation10 + $0xa8] sm:$0xff]
        %v453 = vld [vmem:[#allocation10 + $0xb0] sm:$0xff]
        %v454 = vld [vmem:[#allocation10 + $0xb8] sm:$0xff]
        %v455 = vld [vmem:[#allocation10 + $0xc0] sm:$0xff]
        %v456 = vld [vmem:[#allocation10 + $0xc8] sm:$0xff]
        %v457 = vld [vmem:[#allocation10 + $0xd0] sm:$0xff]
        %v458 = vld [vmem:[#allocation10 + $0xd8] sm:$0xff]
        %v459 = vld [vmem:[#allocation10 + $0xe0] sm:$0xff]
        %v460 = vld [vmem:[#allocation10 + $0xe8] sm:$0xff]
        %v461 = vld [vmem:[#allocation10 + $0xf0] sm:$0xff]
        %v462 = vld [vmem:[#allocation10 + $0xf8] sm:$0xff]
        %v463 = vld [vmem:[#allocation10 + $0x100] sm:$0xff]
        %v464 = vld [vmem:[#allocation10 + $0x108] sm:$0xff]
        %v465 = vld [vmem:[#allocation10 + $0x110] sm:$0xff]
        %v466 = vld [vmem:[#allocation10 + $0x118] sm:$0xff]
        %v467 = vld [vmem:[#allocation10 + $0x120] sm:$0xff]
        %v468 = vld [vmem:[#allocation10 + $0x128] sm:$0xff]
        %v469 = vld [vmem:[#allocation10 + $0x130] sm:$0xff]
        %v470 = vld [vmem:[#allocation10 + $0x138] sm:$0xff]
        %v471 = vld [vmem:[#allocation10 + $0x140] sm:$0xff]
        %v472 = vld [vmem:[#allocation10 + $0x148] sm:$0xff]
        %v473 = vld [vmem:[#allocation10 + $0x150] sm:$0xff]
        %v474 = vld [vmem:[#allocation10 + $0x158] sm:$0xff]
        %v475 = vld [vmem:[#allocation10 + $0x160] sm:$0xff]
        %v476 = vld [vmem:[#allocation10 + $0x168] sm:$0xff]
        %v477 = vld [vmem:[#allocation10 + $0x170] sm:$0xff]
        %v478 = vld [vmem:[#allocation10 + $0x178] sm:$0xff]
        %v479 = vld [vmem:[%s5] sm:$0x7]
        %v481 = vperm.slane %v479, 0
        %v482 = vperm.slane %v479, 1
        %v483 = vperm.slane %v479, 2
        %487 = vmatpush.msra.mxu0 %v476
        %488 = vmatpush.msra.mxu0 %v473
        %489 = vmatpush.msra.mxu0 %v470
        %490 = vmatpush.msra.mxu0 %v467
        %491 = vmatpush.msra.mxu0 %v464
        %492 = vmatpush.msra.mxu0 %v461
        %493 = vmatpush.msra.mxu0 %v458
        %494 = vmatpush.msra.mxu0 %v455
        %495 = vmatpush.msra.mxu0 %v452
        %496 = vmatpush.msra.mxu0 %v449
        %497 = vmatpush.msra.mxu0 %v446
        %498 = vmatpush.msra.mxu0 %v443
        %499 = vmatpush.msra.mxu0 %v440
        %500 = vmatpush.msra.mxu0 %v437
        %501 = vmatpush.msra.mxu0 %v434
        %502 = vmatpush.msra.mxu0 %v431
        %503 = vmatmul.f32.gmra.mxu0 %v429
        %v504 = vpop.f32.mrf.mxu0
        %v505 = vadd.f32 %v481, %v504
        %506 = vdwg.mxu0
        %507 = vmatpush.msra.mxu0 %v477
        %508 = vmatpush.msra.mxu0 %v474
        %509 = vmatpush.msra.mxu0 %v471
        %510 = vmatpush.msra.mxu0 %v468
        %511 = vmatpush.msra.mxu0 %v465
        %512 = vmatpush.msra.mxu0 %v462
        %513 = vmatpush.msra.mxu0 %v459
        %514 = vmatpush.msra.mxu0 %v456
        %515 = vmatpush.msra.mxu0 %v453
        %516 = vmatpush.msra.mxu0 %v450
        %517 = vmatpush.msra.mxu0 %v447
        %518 = vmatpush.msra.mxu0 %v444
        %519 = vmatpush.msra.mxu0 %v441
        %520 = vmatpush.msra.mxu0 %v438
        %521 = vmatpush.msra.mxu0 %v435
        %522 = vmatpush.msra.mxu0 %v432
        %523 = vmatmul.f32.gmra.mxu0 %v429
        %v524 = vpop.f32.mrf.mxu0
        %v525 = vadd.f32 %v482, %v524
        %526 = vdwg.mxu0
        %527 = vmatpush.msra.mxu0 %v478
        %528 = vmatpush.msra.mxu0 %v475
        %529 = vmatpush.msra.mxu0 %v472
        %530 = vmatpush.msra.mxu0 %v469
        %531 = vmatpush.msra.mxu0 %v466
        %532 = vmatpush.msra.mxu0 %v463
        %533 = vmatpush.msra.mxu0 %v460
        %534 = vmatpush.msra.mxu0 %v457
        %535 = vmatpush.msra.mxu0 %v454
        %536 = vmatpush.msra.mxu0 %v451
        %537 = vmatpush.msra.mxu0 %v448
        %538 = vmatpush.msra.mxu0 %v445
        %539 = vmatpush.msra.mxu0 %v442
        %540 = vmatpush.msra.mxu0 %v439
        %541 = vmatpush.msra.mxu0 %v436
        %542 = vmatpush.msra.mxu0 %v433
        %543 = vmatmul.f32.gmra.mxu0 %v429
        %v544 = vpop.f32.mrf.mxu0
        %v545 = vadd.f32 %v483, %v544
        %546 = vdwg.mxu0
        %v547 = vmul.f32 %v429, %v505
        %v548 = vadd.f32 %v547, %v429
        %v549 = vmul.f32 %v548, %v525
        %v550 = vadd.f32 %v549, %v429
        %v551 = vmul.f32 %v550, %v545
        %v552 = vadd.f32 %v551, %v429
        %553 = vst [vmem:[%s356] sm:$0xff] %v552
        %s554 = sand.u32 %s171, 1
        %s555 = scalar_lea.sflag [#allocation4], %s554
        %s556 = sand.u32 %s171, 1
        %s557 = smul.addr %s556, 8
        %s558 = scalar_lea.vmem [#allocation11], %s557
        // Predicated region
        $region65: #{tpu_custom_call.1} parent=43 // pred_check
          %p559 = pneg %p181
        $region66: #{tpu_custom_call.1} parent=43 // pred_check_branch
          %561 = sbr.rel (%p559) target = $region68
        $region67: #{tpu_custom_call.1} parent=43 // pred_region
          %563 = vsyncadd %s555, 0
          %s564 = smul.addr %s27, 8
          %s565 = scalar_lea.hbm %s6, %s564
          %s567 = sshll.u32 %s558, 4
          %s568 = int_to_ptr.vmem [resolvable:$true] %s567
          %s569 = sshll.u32 %s565, 4
          %s570 = int_to_ptr.hbm [resolvable:$true] %s569
          %572 = dma.vmem_to_hbm [thread:$0]  %s568, 128, %s570, %s555
        $region68: #{tpu_custom_call.1} parent=43 // pred_fallthru
          _
      $region44: #{tpu_custom_call.1} parent=5 // pred_fallthru
        _
      %p573 = scmp.le.s32.totalorder 2, %s22
      // Predicated region
      $region69: #{tpu_custom_call.1} parent=5 // pred_check
        %p574 = pneg %p573
      $region70: #{tpu_custom_call.1} parent=5 // pred_check_branch
        %576 = sbr.rel (%p574) target = $region72
      $region71: #{tpu_custom_call.1} parent=5 // pred_region
        %s577 = ssub.s32 %s22, 2
        // Predicated region
        $region73: #{tpu_custom_call.1} parent=71 // pred_check
          %p578 = pneg %p187
        $region74: #{tpu_custom_call.1} parent=71 // pred_check_branch
          %580 = sbr.rel (%p578) target = $region76
        $region75: #{tpu_custom_call.1} parent=71 // pred_region
          %s581 = sand.u32 %s172, 1
          %s582 = scalar_lea.sflag [#allocation4], %s581
          %s583 = sand.u32 %s172, 1
          %s584 = smul.addr %s583, 8
          %s585 = scalar_lea.vmem [#allocation11], %s584
          %587 = dma.done %s582, 128
        $region76: #{tpu_custom_call.1} parent=71 // pred_fallthru
          _
      $region72: #{tpu_custom_call.1} parent=5 // pred_fallthru
        _
    $region6: #{tpu_custom_call.1} parent=1 // loop_footer
      %s26 = sadd.s32 1, %s22
    $region7: #{tpu_custom_call.1} parent=1 // loop_footer_branch
      %21 = sbr.rel target = $region3
    $region8: #{tpu_custom_call.1} parent=1 // loop_exit
      _
    %588 = vsyncpa [#allocation3], 1
    %s589 = scalar_lea.sflag [#allocation3], 1
    %590 = vsyncpa %s589, 1
    %591 = vsyncpa [#allocation6], 1
    %s592 = scalar_lea.sflag [#allocation6], 1
    %593 = vsyncpa %s592, 1
    %594 = vsyncpa [#allocation9], 1
    %595 = vsyncpa [#allocation4], 1
    %s596 = scalar_lea.sflag [#allocation4], 1
    %597 = vsyncpa %s596, 1

</llo_original>
